<compile_context>
chip_gen: v6e
topology: v6e:2x2x1
jax: 0.10.0
libtpu: 0.0.40
codegen_flags: <defaults>
</compile_context>

<pallas_src>
import functools

import jax
import jax.numpy as jnp
from jax import lax
from jax.experimental import pallas as pl
from jax.experimental.pallas import tpu as pltpu

EPS = 1e-5
MXU_DTYPE = jnp.bfloat16      # matmul operand dtype (f32 accumulation everywhere)


# ---------------------------------------------------------------------------
# in-kernel helpers
# ---------------------------------------------------------------------------
def _partial_stats(y):
    """(rows, C) f32 -> (2, C) [sum, sum_of_squares] partial BN statistics."""
    return jnp.concatenate(
        [jnp.sum(y, axis=0, keepdims=True),
         jnp.sum(y * y, axis=0, keepdims=True)], axis=0)


def _bn_scale_shift(stats_ref, g_ref, b_ref, count):
    """Fold GLOBAL batch statistics into y*scale + shift (one VPU apply pass)."""
    s = jnp.sum(stats_ref[...], axis=0)                     # (2, C) over all tiles
    inv = 1.0 / count
    mean = s[0:1, :] * inv                                  # (1, C)
    var = jnp.maximum(s[1:2, :] * inv - mean * mean, 0.0)   # biased variance
    scale = g_ref[...] * lax.rsqrt(var + EPS)
    shift = b_ref[...] - mean * scale
    return scale, shift


# ---------------------------------------------------------------------------
# kernel 1: conv1 (1x1) + projection-shortcut conv (1x1, stride) on one x tile
# ---------------------------------------------------------------------------
def _conv1_shortcut_kernel(x_ref, w1_ref, ws_ref,
                           y1_ref, ys_ref, s1_ref, ss_ref, *, stride):
    x = x_ref[...]                                          # (1, H, W, Cin) bf16
    _, H, W, Cin = x.shape
    P = w1_ref.shape[1]
    Cout = ws_ref.shape[1]
    Ho, Wo = ys_ref.shape[1], ys_ref.shape[2]

    # conv1: one MXU matmul, bf16 operands, f32 accumulation.
    y1 = jnp.dot(x.reshape(H * W, Cin), w1_ref[...],
                 preferred_element_type=jnp.float32)
    y1_ref[...] = y1.reshape(1, H, W, P)
    s1_ref[...] = _partial_stats(y1)[None]

    # projection shortcut: subsample x ONCE, then a single 1x1 matmul.
    if stride == 1:
        xs = x
    else:
        xs = lax.slice(x, (0, 0, 0, 0), (1, H, W, Cin), (1, stride, stride, 1))
    ys = jnp.dot(xs.reshape(Ho * Wo, Cin), ws_ref[...],
                 preferred_element_type=jnp.float32)
    ys_ref[...] = ys.reshape(1, Ho, Wo, Cout)
    ss_ref[...] = _partial_stats(ys)[None]


# ---------------------------------------------------------------------------
# kernel 2: bn1 + relu -> 3x3 conv (stride, pad=1) as ONE im2col matmul
# ---------------------------------------------------------------------------
def _bn_relu_conv3x3_kernel(y1_ref, s1_ref, g1_ref, b1_ref, w2_ref,
                            y2_ref, s2_ref, pad_ref, *, stride, count):
    _, H, W, P = y1_ref.shape
    Ho, Wo = y2_ref.shape[1], y2_ref.shape[2]

    # bn1 with global batch stats, folded scale/shift, relu, cast to bf16.
    scale, shift = _bn_scale_shift(s1_ref, g1_ref, b1_ref, count)
    h1 = jnp.maximum(y1_ref[...].reshape(H * W, P) * scale + shift, 0.0)
    h1 = h1.astype(MXU_DTYPE)

    # Stage zero-padded activations in VMEM: zero ONLY the 1-pixel halo and
    # write the interior exactly once (halo re-zeroed every tile because the
    # scratch is reused across grid steps / cores).
    zrow = jnp.zeros((1, 1, W + 2, P), MXU_DTYPE)
    zcol = jnp.zeros((1, H, 1, P), MXU_DTYPE)
    pad_ref[:, 0:1, :, :] = zrow
    pad_ref[:, H + 1:H + 2, :, :] = zrow
    pad_ref[:, 1:H + 1, 0:1, :] = zcol
    pad_ref[:, 1:H + 1, W + 1:W + 2, :] = zcol
    pad_ref[:, 1:H + 1, 1:W + 1, :] = h1.reshape(1, H, W, P)
    padded = pad_ref[...]                                   # (1, H+2, W+2, P)

    # im2col: gather the 9 taps once into a (Ho*Wo, 9*P) slab, then a single
    # MXU matmul with K = 9*P (instead of 9 tiny-K matmuls + 8 adds).
    cols = []
    for ky in range(3):
        for kx in range(3):
            tap = lax.slice(
                padded, (0, ky, kx, 0),
                (1, ky + stride * (Ho - 1) + 1, kx + stride * (Wo - 1) + 1, P),
                (1, stride, stride, 1))
            cols.append(tap.reshape(Ho * Wo, P))
    col = jnp.concatenate(cols, axis=1)                     # (Ho*Wo, 9*P)

    y2 = jnp.dot(col, w2_ref[...], preferred_element_type=jnp.float32)
    y2_ref[...] = y2.reshape(1, Ho, Wo, P)
    s2_ref[...] = _partial_stats(y2)[None]


# ---------------------------------------------------------------------------
# kernel 3: bn2 + relu -> conv3 (1x1)
# ---------------------------------------------------------------------------
def _bn_relu_conv1x1_kernel(y2_ref, s2_ref, g2_ref, b2_ref, w3_ref,
                            y3_ref, s3_ref, *, count):
    _, Ho, Wo, P = y2_ref.shape
    Cout = w3_ref.shape[1]
    scale, shift = _bn_scale_shift(s2_ref, g2_ref, b2_ref, count)
    h2 = jnp.maximum(y2_ref[...].reshape(Ho * Wo, P) * scale + shift, 0.0)
    y3 = jnp.dot(h2.astype(MXU_DTYPE), w3_ref[...],
                 preferred_element_type=jnp.float32)
    y3_ref[...] = y3.reshape(1, Ho, Wo, Cout)
    s3_ref[...] = _partial_stats(y3)[None]


# ---------------------------------------------------------------------------
# kernel 4: bn3(main) + bn_s(shortcut) -> residual add -> relu
# ---------------------------------------------------------------------------
def _bn_add_relu_kernel(y3_ref, s3_ref, g3_ref, b3_ref,
                        ys_ref, ss_ref, gs_ref, bs_ref, o_ref, *, count):
    _, Ho, Wo, C = y3_ref.shape
    sc3, sh3 = _bn_scale_shift(s3_ref, g3_ref, b3_ref, count)
    scs, shs = _bn_scale_shift(ss_ref, gs_ref, bs_ref, count)
    main = y3_ref[...].reshape(Ho * Wo, C) * sc3 + sh3
    short = ys_ref[...].reshape(Ho * Wo, C) * scs + shs
    o_ref[...] = jnp.maximum(main + short, 0.0).reshape(1, Ho, Wo, C)


# ---------------------------------------------------------------------------
# wrapper
# ---------------------------------------------------------------------------
def bottleneck_forward(x_nchw, params, stride=1):
    """NCHW in -> NCHW out.  Four sample-parallel Pallas kernels."""
    x = jnp.transpose(x_nchw, (0, 2, 3, 1)).astype(MXU_DTYPE)     # NHWC, bf16
    N, H, W, Cin = x.shape
    P = params["w1"].shape[1]
    Cout = params["w3"].shape[1]
    Ho = (H - 1) // stride + 1
    Wo = (W - 1) // stride + 1
    rows1 = N * H * W
    rows2 = N * Ho * Wo

    w1 = params["w1"].astype(MXU_DTYPE)                           # (Cin, P)
    w2 = params["w2"].reshape(9 * P, P).astype(MXU_DTYPE)         # im2col weight
    w3 = params["w3"].astype(MXU_DTYPE)                           # (P, Cout)
    ws = params["ws"].astype(MXU_DTYPE)                           # (Cin, Cout)
    g1, b1 = params["g1"], params["b1"]
    g2, b2 = params["g2"], params["b2"]
    g3, b3 = params["g3"], params["b3"]
    gs, bs = params["gs"], params["bs"]

    f32 = jnp.float32
    cparams = pltpu.CompilerParams(
        dimension_semantics=("parallel",),          # megacore sharding on v7x
        vmem_limit_bytes=48 * 1024 * 1024)          # explicit, < v7x 64 MiB physical

    def tile(shape):                                # per-sample block
        nd = len(shape)
        return pl.BlockSpec((1,) + tuple(shape[1:]),
                            lambda n, nd=nd: (n,) + (0,) * (nd - 1))

    def whole(shape):                               # full (small) array each step
        nd = len(shape)
        return pl.BlockSpec(tuple(shape), lambda n, nd=nd: (0,) * nd)

    # --- kernel 1: conv1 + shortcut conv (both read the same x tile) --------
    k1_bytes = (rows1 * Cin * 2 + Cin * (P + Cout) * 2
                + rows1 * P * 4 + rows2 * Cout * 4 + N * 2 * (P + Cout) * 4)
    y1, ys, s1, ss = pl.pallas_call(
        functools.partial(_conv1_shortcut_kernel, stride=stride),
        grid=(N,),
        in_specs=[tile(x.shape), whole(w1.shape), whole(ws.shape)],
        out_specs=(tile((N, H, W, P)), tile((N, Ho, Wo, Cout)),
                   tile((N, 2, P)), tile((N, 2, Cout))),
        out_shape=(jax.ShapeDtypeStruct((N, H, W, P), f32),
                   jax.ShapeDtypeStruct((N, Ho, Wo, Cout), f32),
                   jax.ShapeDtypeStruct((N, 2, P), f32),
                   jax.ShapeDtypeStruct((N, 2, Cout), f32)),
        compiler_params=cparams,
        cost_estimate=pl.CostEstimate(
            flops=2 * rows1 * Cin * P + 2 * rows2 * Cin * Cout,
            transcendentals=0, bytes_accessed=k1_bytes),
    )(x, w1, ws)

    # --- kernel 2: bn1+relu -> 3x3 conv via single im2col matmul ------------
    k2_bytes = rows1 * P * 4 + 9 * P * P * 2 + rows2 * P * 4 + N * 2 * P * 8
    y2, s2 = pl.pallas_call(
        functools.partial(_bn_relu_conv3x3_kernel, stride=stride,
                          count=float(rows1)),
        grid=(N,),
        in_specs=[tile((N, H, W, P)), whole((N, 2, P)),
                  whole(g1.shape), whole(b1.shape), whole(w2.shape)],
        out_specs=(tile((N, Ho, Wo, P)), tile((N, 2, P))),
        out_shape=(jax.ShapeDtypeStruct((N, Ho, Wo, P), f32),
                   jax.ShapeDtypeStruct((N, 2, P), f32)),
        scratch_shapes=[pltpu.VMEM((1, H + 2, W + 2, P), MXU_DTYPE)],
        compiler_params=cparams,
        cost_estimate=pl.CostEstimate(flops=2 * rows2 * (9 * P) * P,
                                      transcendentals=0, bytes_accessed=k2_bytes),
    )(y1, s1, g1, b1, w2)

    # --- kernel 3: bn2+relu -> conv3 (1x1) -----------------------------------
    k3_bytes = rows2 * P * 4 + P * Cout * 2 + rows2 * Cout * 4 + N * 2 * (P + Cout) * 4
    y3, s3 = pl.pallas_call(
        functools.partial(_bn_relu_conv1x1_kernel, count=float(rows2)),
        grid=(N,),
        in_specs=[tile((N, Ho, Wo, P)), whole((N, 2, P)),
                  whole(g2.shape), whole(b2.shape), whole(w3.shape)],
        out_specs=(tile((N, Ho, Wo, Cout)), tile((N, 2, Cout))),
        out_shape=(jax.ShapeDtypeStruct((N, Ho, Wo, Cout), f32),
                   jax.ShapeDtypeStruct((N, 2, Cout), f32)),
        compiler_params=cparams,
        cost_estimate=pl.CostEstimate(flops=2 * rows2 * P * Cout,
                                      transcendentals=0, bytes_accessed=k3_bytes),
    )(y2, s2, g2, b2, w3)

    # --- kernel 4: bn3 + bn_s -> residual add -> relu ------------------------
    k4_bytes = 3 * rows2 * Cout * 4 + 2 * N * 2 * Cout * 4
    out = pl.pallas_call(
        functools.partial(_bn_add_relu_kernel, count=float(rows2)),
        grid=(N,),
        in_specs=[tile((N, Ho, Wo, Cout)), whole((N, 2, Cout)),
                  whole(g3.shape), whole(b3.shape),
                  tile((N, Ho, Wo, Cout)), whole((N, 2, Cout)),
                  whole(gs.shape), whole(bs.shape)],
        out_specs=tile((N, Ho, Wo, Cout)),
        out_shape=jax.ShapeDtypeStruct((N, Ho, Wo, Cout), f32),
        compiler_params=cparams,
        cost_estimate=pl.CostEstimate(flops=6 * rows2 * Cout,
                                      transcendentals=0, bytes_accessed=k4_bytes),
    )(y3, s3, g3, b3, ys, ss, gs, bs)

    return jnp.transpose(out, (0, 3, 1, 2))                        # NCHW


# ---------------------------------------------------------------------------
# parameters / reference
# ---------------------------------------------------------------------------
def init_params(key, in_planes, planes, expansion=4):
    """Deterministic synthetic parameters. 1x1 convs stored as (Cin, Cout),
    3x3 conv as (kh, kw, Cin, Cout) (PyTorch (Cout,Cin,kh,kw) transposed)."""
    cout = expansion * planes
    ks = jax.random.split(key, 12)
    n = lambda k, shp, s=0.1: s * jax.random.normal(k, shp, jnp.float32)
    return {
        "w1": n(ks[0], (in_planes, planes)),
        "g1": 1.0 + n(ks[1], (1, planes)), "b1": n(ks[2], (1, planes)),
        "w2": n(ks[3], (3, 3, planes, planes)),
        "g2": 1.0 + n(ks[4], (1, planes)), "b2": n(ks[5], (1, planes)),
        "w3": n(ks[6], (planes, cout)),
        "g3": 1.0 + n(ks[7], (1, cout)), "b3": n(ks[8], (1, cout)),
        "ws": n(ks[9], (in_planes, cout)),
        "gs": 1.0 + n(ks[10], (1, cout)), "bs": n(ks[11], (1, cout)),
    }


def reference_forward(x_nchw, p, stride=1):
    """Pure-JAX reference with the same numerics policy as the kernels:
    bf16 matmul operands, f32 accumulation, f32 training-mode BatchNorm."""
    x = jnp.transpose(x_nchw, (0, 2, 3, 1)).astype(jnp.float32)

    def bn(y, g, b):
        m = y.mean(axis=(0, 1, 2), keepdims=True)
        v = ((y - m) ** 2).mean(axis=(0, 1, 2), keepdims=True)
        return (y - m) / jnp.sqrt(v + EPS) * g.reshape(1, 1, 1, -1) \
            + b.reshape(1, 1, 1, -1)

    def conv1x1(a, w, s=1):
        return jnp.einsum("nhwc,co->nhwo",
                          a[:, ::s, ::s, :].astype(MXU_DTYPE),
                          w.astype(MXU_DTYPE),
                          preferred_element_type=jnp.float32)

    def conv3x3(a, w, s):
        return lax.conv_general_dilated(
            a.astype(MXU_DTYPE), w.astype(MXU_DTYPE), (s, s), ((1, 1), (1, 1)),
            dimension_numbers=("NHWC", "HWIO", "NHWC"),
            preferred_element_type=jnp.float32)

    h = jax.nn.relu(bn(conv1x1(x, p["w1"]), p["g1"], p["b1"]))
    h = jax.nn.relu(bn(conv3x3(h, p["w2"], stride), p["g2"], p["b2"]))
    h = bn(conv1x1(h, p["w3"]), p["g3"], p["b3"])
    sc = bn(conv1x1(x, p["ws"], stride), p["gs"], p["bs"])
    out = jax.nn.relu(h + sc)
    return jnp.transpose(out, (0, 3, 1, 2))


if __name__ == "__main__":
    in_planes, planes, stride, expansion = 4, 4, 1, 4
    N, H, W = 2, 16, 16

    root = jax.random.PRNGKey(0)
    kp, kx = jax.random.split(root)
    params = init_params(kp, in_planes, planes, expansion)
    x = jax.random.normal(kx, (N, in_planes, H, W), jnp.float32)

    y = jax.block_until_ready(bottleneck_forward(x, params, stride=stride))

    Ho = (H - 1) // stride + 1
    Wo = (W - 1) // stride + 1
    assert y.shape == (N, expansion * planes, Ho, Wo)

    y_ref = reference_forward(x, params, stride=stride)
    max_err = float(jnp.max(jnp.abs(y - y_ref)))
    mean_err = float(jnp.mean(jnp.abs(y - y_ref)))
    if (not bool(jnp.all(jnp.isfinite(y)))) or max_err > 2e-2 or mean_err > 2e-3:
        raise SystemExit(
            f"mismatch vs reference: max abs err = {max_err}, mean = {mean_err}")
    print("KERNEL_OK")
</pallas_src>

<mosaic_0001>
module attributes {stable_mosaic.version = 11 : i64} {
  func.func @_conv1_shortcut_kernel(%arg0: i32, %arg1: memref<1x16x16x4xbf16, #tpu.memory_space<vmem>>, %arg2: memref<4x4xbf16, #tpu.memory_space<vmem>>, %arg3: memref<4x16xbf16, #tpu.memory_space<vmem>>, %arg4: memref<1x16x16x4xf32, #tpu.memory_space<vmem>>, %arg5: memref<1x16x16x16xf32, #tpu.memory_space<vmem>>, %arg6: memref<1x2x4xf32, #tpu.memory_space<vmem>>, %arg7: memref<1x2x16xf32, #tpu.memory_space<vmem>>) attributes {dimension_semantics = [#tpu.dimension_semantics<parallel>], iteration_bounds = array<i64: 2>, scalar_prefetch = 0 : i64, scratch_operands = 0 : i64, tpu.core_type = #tpu.core_type<tc>, window_params = [{transform_indices = @transform_0, window_bounds = array<i64: 1, 16, 16, 4>}, {pipeline_mode = #tpu.pipeline_mode<synchronous>, transform_indices = @transform_1, window_bounds = array<i64: 4, 4>}, {pipeline_mode = #tpu.pipeline_mode<synchronous>, transform_indices = @transform_2, window_bounds = array<i64: 4, 16>}, {transform_indices = @transform_3, window_bounds = array<i64: 1, 16, 16, 4>}, {transform_indices = @transform_4, window_bounds = array<i64: 1, 16, 16, 16>}, {transform_indices = @transform_5, window_bounds = array<i64: 1, 2, 4>}, {transform_indices = @transform_6, window_bounds = array<i64: 1, 2, 16>}]} {
    %c0 = arith.constant 0 : index
    %c0_0 = arith.constant 0 : index
    %c0_1 = arith.constant 0 : index
    %c0_2 = arith.constant 0 : index
    %0 = vector.load %arg1[%c0, %c0_0, %c0_1, %c0_2] : memref<1x16x16x4xbf16, #tpu.memory_space<vmem>>, vector<1x16x16x4xbf16>
    %1 = vector.shape_cast %0 : vector<1x16x16x4xbf16> to vector<256x4xbf16>
    %c0_3 = arith.constant 0 : index
    %c0_4 = arith.constant 0 : index
    %2 = vector.load %arg2[%c0_3, %c0_4] : memref<4x4xbf16, #tpu.memory_space<vmem>>, vector<4x4xbf16>
    %cst = arith.constant dense<0.000000e+00> : vector<256x4xf32>
    %3 = tpu.matmul %1, %2, %cst {dimension_numbers = #tpu.dot_dimension_numbers<[1], [0], [0], [1], [0, 0, 1, 1], [], []>} : vector<256x4xbf16>, vector<4x4xbf16>, vector<256x4xf32> -> vector<256x4xf32>
    %4 = vector.shape_cast %3 : vector<256x4xf32> to vector<1x16x16x4xf32>
    %c0_5 = arith.constant 0 : index
    %c0_6 = arith.constant 0 : index
    %c0_7 = arith.constant 0 : index
    %c0_8 = arith.constant 0 : index
    %5 = vector.load %arg4[%c0_5, %c0_6, %c0_7, %c0_8] : memref<1x16x16x4xf32, #tpu.memory_space<vmem>>, vector<1x16x16x4xf32>
    tpu.vector_store %arg4[%c0_5, %c0_6, %c0_7, %c0_8], %4 {strides = array<i32>} : memref<1x16x16x4xf32, #tpu.memory_space<vmem>>, vector<1x16x16x4xf32>,
    %cst_9 = arith.constant dense<0.000000e+00> : vector<4xf32>
    %6 = vector.multi_reduction <add>, %3, %cst_9 [0] : vector<256x4xf32> to vector<4xf32>
    %7 = vector.shape_cast %6 : vector<4xf32> to vector<1x4xf32>
    %8 = arith.mulf %3, %3 : vector<256x4xf32>
    %cst_10 = arith.constant dense<0.000000e+00> : vector<4xf32>
    %9 = vector.multi_reduction <add>, %8, %cst_10 [0] : vector<256x4xf32> to vector<4xf32>
    %10 = vector.shape_cast %9 : vector<4xf32> to vector<1x4xf32>
    %11 = tpu.concatenate %7, %10 in 0 : vector<1x4xf32>, vector<1x4xf32> -> vector<2x4xf32>
    %12 = vector.shape_cast %11 : vector<2x4xf32> to vector<1x2x4xf32>
    %c0_11 = arith.constant 0 : index
    %c0_12 = arith.constant 0 : index
    %c0_13 = arith.constant 0 : index
    %13 = vector.load %arg6[%c0_11, %c0_12, %c0_13] : memref<1x2x4xf32, #tpu.memory_space<vmem>>, vector<1x2x4xf32>
    tpu.vector_store %arg6[%c0_11, %c0_12, %c0_13], %12 {strides = array<i32>} : memref<1x2x4xf32, #tpu.memory_space<vmem>>, vector<1x2x4xf32>,
    %14 = vector.shape_cast %0 : vector<1x16x16x4xbf16> to vector<256x4xbf16>
    %c0_14 = arith.constant 0 : index
    %c0_15 = arith.constant 0 : index
    %15 = vector.load %arg3[%c0_14, %c0_15] : memref<4x16xbf16, #tpu.memory_space<vmem>>, vector<4x16xbf16>
    %cst_16 = arith.constant dense<0.000000e+00> : vector<256x16xf32>
    %16 = tpu.matmul %14, %15, %cst_16 {dimension_numbers = #tpu.dot_dimension_numbers<[1], [0], [0], [1], [0, 0, 1, 1], [], []>} : vector<256x4xbf16>, vector<4x16xbf16>, vector<256x16xf32> -> vector<256x16xf32>
    %17 = vector.shape_cast %16 : vector<256x16xf32> to vector<1x16x16x16xf32>
    %c0_17 = arith.constant 0 : index
    %c0_18 = arith.constant 0 : index
    %c0_19 = arith.constant 0 : index
    %c0_20 = arith.constant 0 : index
    %18 = vector.load %arg5[%c0_17, %c0_18, %c0_19, %c0_20] : memref<1x16x16x16xf32, #tpu.memory_space<vmem>>, vector<1x16x16x16xf32>
    tpu.vector_store %arg5[%c0_17, %c0_18, %c0_19, %c0_20], %17 {strides = array<i32>} : memref<1x16x16x16xf32, #tpu.memory_space<vmem>>, vector<1x16x16x16xf32>,
    %cst_21 = arith.constant dense<0.000000e+00> : vector<16xf32>
    %19 = vector.multi_reduction <add>, %16, %cst_21 [0] : vector<256x16xf32> to vector<16xf32>
    %20 = vector.shape_cast %19 : vector<16xf32> to vector<1x16xf32>
    %21 = arith.mulf %16, %16 : vector<256x16xf32>
    %cst_22 = arith.constant dense<0.000000e+00> : vector<16xf32>
    %22 = vector.multi_reduction <add>, %21, %cst_22 [0] : vector<256x16xf32> to vector<16xf32>
    %23 = vector.shape_cast %22 : vector<16xf32> to vector<1x16xf32>
    %24 = tpu.concatenate %20, %23 in 0 : vector<1x16xf32>, vector<1x16xf32> -> vector<2x16xf32>
    %25 = vector.shape_cast %24 : vector<2x16xf32> to vector<1x2x16xf32>
    %c0_23 = arith.constant 0 : index
    %c0_24 = arith.constant 0 : index
    %c0_25 = arith.constant 0 : index
    %26 = vector.load %arg7[%c0_23, %c0_24, %c0_25] : memref<1x2x16xf32, #tpu.memory_space<vmem>>, vector<1x2x16xf32>
    tpu.vector_store %arg7[%c0_23, %c0_24, %c0_25], %25 {strides = array<i32>} : memref<1x2x16xf32, #tpu.memory_space<vmem>>, vector<1x2x16xf32>,
    return
  }
  func.func @transform_0(%arg0: i32) -> (i32, i32, i32, i32) {
    %c0_i32 = arith.constant 0 : i32
    %c0_i32_0 = arith.constant 0 : i32
    %c0_i32_1 = arith.constant 0 : i32
    %c0_i32_2 = arith.constant 0 : i32
    return %arg0, %c0_i32, %c0_i32_0, %c0_i32_1 : i32, i32, i32, i32
  }
  func.func @transform_1(%arg0: i32) -> (i32, i32) {
    %c0_i32 = arith.constant 0 : i32
    %c0_i32_0 = arith.constant 0 : i32
    %c0_i32_1 = arith.constant 0 : i32
    return %c0_i32, %c0_i32_0 : i32, i32
  }
  func.func @transform_2(%arg0: i32) -> (i32, i32) {
    %c0_i32 = arith.constant 0 : i32
    %c0_i32_0 = arith.constant 0 : i32
    %c0_i32_1 = arith.constant 0 : i32
    return %c0_i32, %c0_i32_0 : i32, i32
  }
  func.func @transform_3(%arg0: i32) -> (i32, i32, i32, i32) {
    %c0_i32 = arith.constant 0 : i32
    %c0_i32_0 = arith.constant 0 : i32
    %c0_i32_1 = arith.constant 0 : i32
    %c0_i32_2 = arith.constant 0 : i32
    return %arg0, %c0_i32, %c0_i32_0, %c0_i32_1 : i32, i32, i32, i32
  }
  func.func @transform_4(%arg0: i32) -> (i32, i32, i32, i32) {
    %c0_i32 = arith.constant 0 : i32
    %c0_i32_0 = arith.constant 0 : i32
    %c0_i32_1 = arith.constant 0 : i32
    %c0_i32_2 = arith.constant 0 : i32
    return %arg0, %c0_i32, %c0_i32_0, %c0_i32_1 : i32, i32, i32, i32
  }
  func.func @transform_5(%arg0: i32) -> (i32, i32, i32) {
    %c0_i32 = arith.constant 0 : i32
    %c0_i32_0 = arith.constant 0 : i32
    %c0_i32_1 = arith.constant 0 : i32
    return %arg0, %c0_i32, %c0_i32_0 : i32, i32, i32
  }
  func.func @transform_6(%arg0: i32) -> (i32, i32, i32) {
    %c0_i32 = arith.constant 0 : i32
    %c0_i32_0 = arith.constant 0 : i32
    %c0_i32_1 = arith.constant 0 : i32
    return %arg0, %c0_i32, %c0_i32_0 : i32, i32, i32
  }
}

</mosaic_0001>

<llo_original>
// kernel: tpu_custom_call.1
$region0: #{tpu_custom_call.1}
  #allocation0 [shape = 'u32[]', space=smem, size = 0x4, offset = 0x4, fixed_abs, tag = 'smem constant byte address 0x4 - core index']
  #allocation1 [shape = 'u32[144,128]{1,0:T(1,128)}', space=vmem, size = 0x12000, scoped, tag = 'internal scratch']
  %s0 = inlined_call_operand.vmem [shape: bf16[2,16,16,4], index: 0, kind: input, shape index: {}]
  %s1 = inlined_call_operand.vmem [shape: bf16[4,4], index: 1, kind: input, shape index: {}]
  %s2 = inlined_call_operand.vmem [shape: bf16[4,16], index: 2, kind: input, shape index: {}]
  %s3 = inlined_call_operand.vmem [shape: f32[2,16,16,4], index: 3, kind: output, shape index: {0}]
  %s4 = inlined_call_operand.hbm [shape: f32[2,16,16,16], index: 4, kind: output, shape index: {1}]
  %s5 = inlined_call_operand.hbm [shape: f32[2,2,4], index: 5, kind: output, shape index: {2}]
  %s6 = inlined_call_operand.hbm [shape: f32[2,2,16], index: 6, kind: output, shape index: {3}]
  %7 = xla_tuple %s3, %s4, %s5, %s6
  %s8 = sld [smem:[#allocation0]]
  $region69: #{tpu_custom_call.1} parent=0
    _
  %s10 = ssub.s32 1, %s8
  %s11 = scalar_select 0, %s10, %s8
  $region1: #{tpu_custom_call.1} parent=0
    #allocation2 [shape = 'u8[262144]{0}', space=vmem, size = 0x40000, scoped, tag = 'output window, operand 1']
    #allocation3 [shape = 's32[2]{0}', space=sflag, size = 0x8, scoped, tag = 'scoped memory for tpu_custom_call.1']
    #allocation4 [shape = 'u8[2048]{0}', space=vmem, size = 0x800, scoped, tag = 'output window, operand 2']
    #allocation5 [shape = 's32[2]{0}', space=sflag, size = 0x8, scoped, tag = 'scoped memory for tpu_custom_call.1']
    #allocation6 [shape = 'u8[2048]{0}', space=vmem, size = 0x800, scoped, tag = 'output window, operand 3']
    %12 = vsyncpa [#allocation3], 0
    %s13 = scalar_lea.sflag [#allocation3], 1
    %14 = vsyncpa %s13, 0
    %15 = vsyncpa [#allocation5], 0
    %s16 = scalar_lea.sflag [#allocation5], 1
    %17 = vsyncpa %s16, 0
    loop: start=0, step=1, limit=4
    $region2: #{tpu_custom_call.1} parent=1 // loop_pre_header
      _
    $region3: #{tpu_custom_call.1} parent=1 // loop_header
      %s19 = sphi 0, %s23
      %p20 = scmp.ge.s32.totalorder %s19, 4
      %s29 = sphi 0, %s31
      %s32 = sphi 0, %s29
      %s33 = sphi 0, %s32
      %s49 = sphi 0, %s33
      %s53 = sphi 0, %s53
      %s55 = sphi 0, %s53
      %s56 = sphi 0, %s55
      %s70 = sphi 0, %s56
      %s74 = sphi 0, %s74
      %s76 = sphi 0, %s74
      %s77 = sphi 0, %s76
      %s91 = sphi 0, %s77
      %s97 = sphi 0, %s99
      %s100 = sphi 0, %s97
      %s101 = sphi 0, %s100
      %s117 = sphi 0, %s101
      %s123 = sphi 0, %s125
      %s126 = sphi 0, %s123
      %s127 = sphi 0, %s126
      %s143 = sphi 0, %s127
      %s149 = sphi 0, %s151
      %s152 = sphi 0, %s149
      %s153 = sphi 0, %s152
      %s169 = sphi 0, %s153
      %s175 = sphi 0, %s177
      %s178 = sphi 0, %s175
      %s179 = sphi 0, %s178
      %s195 = sphi 0, %s179
    $region4: #{tpu_custom_call.1} parent=1 // loop_header_branch
      %22 = sbr.rel (%p20) target = $region8
    $region5: #{tpu_custom_call.1} parent=1 // loop_body
      %s24 = ssub.s32 %s19, 1
      %s25 = ssub.s32 %s19, 2
      %s26 = sadd.s32 %s19, 1
      %s27 = ssub.s32 %s19, %s26
      %p28 = scmp.eq.s32.totalorder %s27, 0
      %s30 = sadd.s32 %s29, 1
      %s31 = scalar_select %p28, %s29, %s30
      %p34 = pneg %p28
      %p35 = scmp.eq.s32.totalorder %s19, 1
      %p36 = por %p34, %p35
      %p37 = scmp.ne.s32.totalorder %s29, %s32
      %p38 = scmp.eq.s32.totalorder %s19, 0
      %p39 = por %p37, %p38
      %p40 = scmp.ne.s32.totalorder %s29, %s32
      %p41 = scmp.eq.s32.totalorder %s24, 1
      %p42 = por %p40, %p41
      %p43 = scmp.ne.s32.totalorder %s32, %s33
      %p44 = scmp.eq.s32.totalorder %s24, 0
      %p45 = por %p43, %p44
      %p46 = scmp.ne.s32.totalorder %s32, %s33
      %p47 = scmp.eq.s32.totalorder %s25, 1
      %p48 = por %p46, %p47
      %p50 = scmp.ne.s32.totalorder %s33, %s49
      %p51 = scmp.eq.s32.totalorder %s25, 0
      %p52 = por %p50, %p51
      %s54 = sadd.s32 %s53, 1
      %p57 = scmp.eq.s32.totalorder %s19, 1
      %p58 = scmp.ne.s32.totalorder %s53, %s55
      %p59 = scmp.eq.s32.totalorder %s19, 0
      %p60 = por %p58, %p59
      %p61 = scmp.ne.s32.totalorder %s53, %s55
      %p62 = scmp.eq.s32.totalorder %s24, 1
      %p63 = por %p61, %p62
      %p64 = scmp.ne.s32.totalorder %s55, %s56
      %p65 = scmp.eq.s32.totalorder %s24, 0
      %p66 = por %p64, %p65
      %p67 = scmp.ne.s32.totalorder %s55, %s56
      %p68 = scmp.eq.s32.totalorder %s25, 1
      %p69 = por %p67, %p68
      %p71 = scmp.ne.s32.totalorder %s56, %s70
      %p72 = scmp.eq.s32.totalorder %s25, 0
      %p73 = por %p71, %p72
      %s75 = sadd.s32 %s74, 1
      %p78 = scmp.eq.s32.totalorder %s19, 1
      %p79 = scmp.ne.s32.totalorder %s74, %s76
      %p80 = scmp.eq.s32.totalorder %s19, 0
      %p81 = por %p79, %p80
      %p82 = scmp.ne.s32.totalorder %s74, %s76
      %p83 = scmp.eq.s32.totalorder %s24, 1
      %p84 = por %p82, %p83
      %p85 = scmp.ne.s32.totalorder %s76, %s77
      %p86 = scmp.eq.s32.totalorder %s24, 0
      %p87 = por %p85, %p86
      %p88 = scmp.ne.s32.totalorder %s76, %s77
      %p89 = scmp.eq.s32.totalorder %s25, 1
      %p90 = por %p88, %p89
      %p92 = scmp.ne.s32.totalorder %s77, %s91
      %p93 = scmp.eq.s32.totalorder %s25, 0
      %p94 = por %p92, %p93
      %s95 = ssub.s32 %s19, %s26
      %p96 = scmp.eq.s32.totalorder %s95, 0
      %s98 = sadd.s32 %s97, 1
      %s99 = scalar_select %p96, %s97, %s98
      %p102 = pneg %p96
      %p103 = scmp.eq.s32.totalorder %s19, 1
      %p104 = por %p102, %p103
      %p105 = scmp.ne.s32.totalorder %s97, %s100
      %p106 = scmp.eq.s32.totalorder %s19, 0
      %p107 = por %p105, %p106
      %p108 = scmp.ne.s32.totalorder %s97, %s100
      %p109 = scmp.eq.s32.totalorder %s24, 1
      %p110 = por %p108, %p109
      %p111 = scmp.ne.s32.totalorder %s100, %s101
      %p112 = scmp.eq.s32.totalorder %s24, 0
      %p113 = por %p111, %p112
      %p114 = scmp.ne.s32.totalorder %s100, %s101
      %p115 = scmp.eq.s32.totalorder %s25, 1
      %p116 = por %p114, %p115
      %p118 = scmp.ne.s32.totalorder %s101, %s117
      %p119 = scmp.eq.s32.totalorder %s25, 0
      %p120 = por %p118, %p119
      %s121 = ssub.s32 %s19, %s26
      %p122 = scmp.eq.s32.totalorder %s121, 0
      %s124 = sadd.s32 %s123, 1
      %s125 = scalar_select %p122, %s123, %s124
      %p128 = pneg %p122
      %p129 = scmp.eq.s32.totalorder %s19, 1
      %p130 = por %p128, %p129
      %p131 = scmp.ne.s32.totalorder %s123, %s126
      %p132 = scmp.eq.s32.totalorder %s19, 0
      %p133 = por %p131, %p132
      %p134 = scmp.ne.s32.totalorder %s123, %s126
      %p135 = scmp.eq.s32.totalorder %s24, 1
      %p136 = por %p134, %p135
      %p137 = scmp.ne.s32.totalorder %s126, %s127
      %p138 = scmp.eq.s32.totalorder %s24, 0
      %p139 = por %p137, %p138
      %p140 = scmp.ne.s32.totalorder %s126, %s127
      %p141 = scmp.eq.s32.totalorder %s25, 1
      %p142 = por %p140, %p141
      %p144 = scmp.ne.s32.totalorder %s127, %s143
      %p145 = scmp.eq.s32.totalorder %s25, 0
      %p146 = por %p144, %p145
      %s147 = ssub.s32 %s19, %s26
      %p148 = scmp.eq.s32.totalorder %s147, 0
      %s150 = sadd.s32 %s149, 1
      %s151 = scalar_select %p148, %s149, %s150
      %p154 = pneg %p148
      %p155 = scmp.eq.s32.totalorder %s19, 1
      %p156 = por %p154, %p155
      %p157 = scmp.ne.s32.totalorder %s149, %s152
      %p158 = scmp.eq.s32.totalorder %s19, 0
      %p159 = por %p157, %p158
      %p160 = scmp.ne.s32.totalorder %s149, %s152
      %p161 = scmp.eq.s32.totalorder %s24, 1
      %p162 = por %p160, %p161
      %p163 = scmp.ne.s32.totalorder %s152, %s153
      %p164 = scmp.eq.s32.totalorder %s24, 0
      %p165 = por %p163, %p164
      %p166 = scmp.ne.s32.totalorder %s152, %s153
      %p167 = scmp.eq.s32.totalorder %s25, 1
      %p168 = por %p166, %p167
      %p170 = scmp.ne.s32.totalorder %s153, %s169
      %p171 = scmp.eq.s32.totalorder %s25, 0
      %p172 = por %p170, %p171
      %s173 = ssub.s32 %s19, %s26
      %p174 = scmp.eq.s32.totalorder %s173, 0
      %s176 = sadd.s32 %s175, 1
      %s177 = scalar_select %p174, %s175, %s176
      %p180 = pneg %p174
      %p181 = scmp.eq.s32.totalorder %s19, 1
      %p182 = por %p180, %p181
      %p183 = scmp.ne.s32.totalorder %s175, %s178
      %p184 = scmp.eq.s32.totalorder %s19, 0
      %p185 = por %p183, %p184
      %p186 = scmp.ne.s32.totalorder %s175, %s178
      %p187 = scmp.eq.s32.totalorder %s24, 1
      %p188 = por %p186, %p187
      %p189 = scmp.ne.s32.totalorder %s178, %s179
      %p190 = scmp.eq.s32.totalorder %s24, 0
      %p191 = por %p189, %p190
      %p192 = scmp.ne.s32.totalorder %s178, %s179
      %p193 = scmp.eq.s32.totalorder %s25, 1
      %p194 = por %p192, %p193
      %p196 = scmp.ne.s32.totalorder %s179, %s195
      %p197 = scmp.eq.s32.totalorder %s25, 0
      %p198 = por %p196, %p197
      %p199 = scmp.le.s32.totalorder 1, %s19
      %p200 = scmp.lt.s32.totalorder %s19, 3
      %p201 = pnand %p199, %p200
      %p202 = pneg %p201
      // Predicated region
      $region9: #{tpu_custom_call.1} parent=5 // pred_check
        _
      $region10: #{tpu_custom_call.1} parent=5 // pred_check_branch
        %204 = sbr.rel (%p201) target = $region12
      $region11: #{tpu_custom_call.1} parent=5 // pred_region
        %s205 = ssub.s32 %s19, 1
        // Predicated region
        $region13: #{tpu_custom_call.1} parent=11 // pred_check
          %p206 = pneg %p66
        $region14: #{tpu_custom_call.1} parent=11 // pred_check_branch
          %208 = sbr.rel (%p206) target = $region16
        $region15: #{tpu_custom_call.1} parent=11 // pred_region
          _
        $region16: #{tpu_custom_call.1} parent=11 // pred_fallthru
          _
        // Predicated region
        $region17: #{tpu_custom_call.1} parent=11 // pred_check
          %p209 = pneg %p87
        $region18: #{tpu_custom_call.1} parent=11 // pred_check_branch
          %211 = sbr.rel (%p209) target = $region20
        $region19: #{tpu_custom_call.1} parent=11 // pred_region
          _
        $region20: #{tpu_custom_call.1} parent=11 // pred_fallthru
          _
      $region12: #{tpu_custom_call.1} parent=5 // pred_fallthru
        _
      %p212 = scmp.lt.s32.totalorder %s19, 2
      // Predicated region
      $region21: #{tpu_custom_call.1} parent=5 // pred_check
        %p213 = pneg %p212
      $region22: #{tpu_custom_call.1} parent=5 // pred_check_branch
        %215 = sbr.rel (%p213) target = $region24
      $region23: #{tpu_custom_call.1} parent=5 // pred_region
        // Predicated region
        $region25: #{tpu_custom_call.1} parent=23 // pred_check
          %p216 = pneg %p39
        $region26: #{tpu_custom_call.1} parent=23 // pred_check_branch
          %218 = sbr.rel (%p216) target = $region28
        $region27: #{tpu_custom_call.1} parent=23 // pred_region
          %p219 = scmp.lt.s32.totalorder %s19, 1
          %s220 = scalar_select %p219, %s19, 1
          %s221 = smul.addr %s220, 32
          %s222 = smul.addr %s221, 4
          %s223 = scalar_lea.vmem %s0, %s222
        $region28: #{tpu_custom_call.1} parent=23 // pred_fallthru
          _
      $region24: #{tpu_custom_call.1} parent=5 // pred_fallthru
        _
      %p224 = scmp.le.s32.totalorder 1, %s19
      %p225 = scmp.lt.s32.totalorder %s19, 3
      %p226 = pnand %p224, %p225
      %p227 = pneg %p226
      // Predicated region
      $region29: #{tpu_custom_call.1} parent=5 // pred_check
        _
      $region30: #{tpu_custom_call.1} parent=5 // pred_check_branch
        %229 = sbr.rel (%p226) target = $region32
      $region31: #{tpu_custom_call.1} parent=5 // pred_region
        %s230 = ssub.s32 %s19, 1
        %p231 = scmp.lt.s32.totalorder %s24, 1
        %s232 = scalar_select %p231, %s24, 1
        %s233 = smul.addr %s232, 32
        %s234 = smul.addr %s233, 4
        %s235 = scalar_lea.vmem %s0, %s234
        %p236 = pneg %p45
        %p237 = pneg %p42
        %p238 = pneg %p66
        %p239 = pneg %p63
        %p240 = pneg %p87
        %p241 = pneg %p84
        %p242 = pneg %p113
        %p243 = pneg %p110
        %p244 = scmp.lt.s32.totalorder %s24, 1
        %s245 = scalar_select %p244, %s24, 1
        %s246 = smul.addr %s245, 32
        %s247 = smul.addr %s246, 8
        %s248 = scalar_lea.vmem %s3, %s247
        %p249 = pneg %p139
        %p250 = pneg %p136
        %s251 = sand.u32 %s126, 1
        %s252 = scalar_lea.sflag [#allocation3], %s251
        %s253 = sand.u32 %s126, 1
        %s254 = smul.addr %s253, 256
        %s255 = scalar_lea.vmem [#allocation2], %s254
        %p256 = pneg %p165
        %p257 = pneg %p162
        %s258 = sand.u32 %s24, 1
        %s259 = scalar_lea.sflag [#allocation5], %s258
        %s260 = sand.u32 %s152, 1
        %s261 = smul.addr %s260, 2
        %s262 = scalar_lea.vmem [#allocation4], %s261
        %p263 = pneg %p191
        %p264 = pneg %p188
        %s265 = sand.u32 %s24, 1
        %s266 = scalar_lea.sflag [#allocation5], %s265
        %s267 = sand.u32 %s178, 1
        %s268 = smul.addr %s267, 2
        %s269 = scalar_lea.vmem [#allocation6], %s268
        %p270 = scmp.lt.s32.totalorder %s24, 1
        %s271 = scalar_select %p270, %s24, 1
        %s272 = smul.addr %s271, 32
        %s273 = smul.addr %s272, 4
        %s274 = scalar_lea.vmem %s0, %s273
        %p275 = scmp.lt.s32.totalorder %s24, 1
        %s276 = scalar_select %p275, %s24, 1
        %s277 = smul.addr %s276, 32
        %s278 = smul.addr %s277, 8
        %s279 = scalar_lea.vmem %s3, %s278
        %v281 = vld [vmem:[%s274] sm:$0xf]
        %v282 = vld [vmem:[%s274 + $0x4] sm:$0xf]
        %v283 = vld [vmem:[%s274 + $0x8] sm:$0xf]
        %v284 = vld [vmem:[%s274 + $0xc] sm:$0xf]
        %v285 = vld [vmem:[%s274 + $0x10] sm:$0xf]
        %v286 = vld [vmem:[%s274 + $0x14] sm:$0xf]
        %v287 = vld [vmem:[%s274 + $0x18] sm:$0xf]
        %v288 = vld [vmem:[%s274 + $0x1c] sm:$0xf]
        %v289 = vld [vmem:[%s274 + $0x20] sm:$0xf]
        %v290 = vld [vmem:[%s274 + $0x24] sm:$0xf]
        %v291 = vld [vmem:[%s274 + $0x28] sm:$0xf]
        %v292 = vld [vmem:[%s274 + $0x2c] sm:$0xf]
        %v293 = vld [vmem:[%s274 + $0x30] sm:$0xf]
        %v294 = vld [vmem:[%s274 + $0x34] sm:$0xf]
        %v295 = vld [vmem:[%s274 + $0x38] sm:$0xf]
        %v296 = vld [vmem:[%s274 + $0x3c] sm:$0xf]
        %v297 = vld [vmem:[%s274 + $0x40] sm:$0xf]
        %v298 = vld [vmem:[%s274 + $0x44] sm:$0xf]
        %v299 = vld [vmem:[%s274 + $0x48] sm:$0xf]
        %v300 = vld [vmem:[%s274 + $0x4c] sm:$0xf]
        %v301 = vld [vmem:[%s274 + $0x50] sm:$0xf]
        %v302 = vld [vmem:[%s274 + $0x54] sm:$0xf]
        %v303 = vld [vmem:[%s274 + $0x58] sm:$0xf]
        %v304 = vld [vmem:[%s274 + $0x5c] sm:$0xf]
        %v305 = vld [vmem:[%s274 + $0x60] sm:$0xf]
        %v306 = vld [vmem:[%s274 + $0x64] sm:$0xf]
        %v307 = vld [vmem:[%s274 + $0x68] sm:$0xf]
        %v308 = vld [vmem:[%s274 + $0x6c] sm:$0xf]
        %v309 = vld [vmem:[%s274 + $0x70] sm:$0xf]
        %v310 = vld [vmem:[%s274 + $0x74] sm:$0xf]
        %v311 = vld [vmem:[%s274 + $0x78] sm:$0xf]
        %v312 = vld [vmem:[%s274 + $0x7c] sm:$0xf]
        %v313 = vld [vmem:[%s1] sm:$0x3]
        %v346 = vunpack.c.l.b16 %v281
        %v347 = vunpack.c.l.b16 %v282
        %v348 = vunpack.c.l.b16 %v283
        %v349 = vunpack.c.l.b16 %v284
        %v350 = vunpack.c.l.b16 %v285
        %v351 = vunpack.c.l.b16 %v286
        %v352 = vunpack.c.l.b16 %v287
        %v353 = vunpack.c.l.b16 %v288
        %v354 = vunpack.c.l.b16 %v289
        %v355 = vunpack.c.l.b16 %v290
        %v356 = vunpack.c.l.b16 %v291
        %v357 = vunpack.c.l.b16 %v292
        %v358 = vunpack.c.l.b16 %v293
        %v359 = vunpack.c.l.b16 %v294
        %v360 = vunpack.c.l.b16 %v295
        %v361 = vunpack.c.l.b16 %v296
        %v362 = vunpack.c.l.b16 %v297
        %v363 = vunpack.c.l.b16 %v298
        %v364 = vunpack.c.l.b16 %v299
        %v365 = vunpack.c.l.b16 %v300
        %v366 = vunpack.c.l.b16 %v301
        %v367 = vunpack.c.l.b16 %v302
        %v368 = vunpack.c.l.b16 %v303
        %v369 = vunpack.c.l.b16 %v304
        %v370 = vunpack.c.l.b16 %v305
        %v371 = vunpack.c.l.b16 %v306
        %v372 = vunpack.c.l.b16 %v307
        %v373 = vunpack.c.l.b16 %v308
        %v374 = vunpack.c.l.b16 %v309
        %v375 = vunpack.c.l.b16 %v310
        %v376 = vunpack.c.l.b16 %v311
        %v377 = vunpack.c.l.b16 %v312
        %v378 = vpack.c.b16 %v347, %v346
        %v379 = vpack.c.b16 %v349, %v348
        %v380 = vpack.c.b16 %v351, %v350
        %v381 = vpack.c.b16 %v353, %v352
        %v382 = vpack.c.b16 %v355, %v354
        %v383 = vpack.c.b16 %v357, %v356
        %v384 = vpack.c.b16 %v359, %v358
        %v385 = vpack.c.b16 %v361, %v360
        %v386 = vpack.c.b16 %v363, %v362
        %v387 = vpack.c.b16 %v365, %v364
        %v388 = vpack.c.b16 %v367, %v366
        %v389 = vpack.c.b16 %v369, %v368
        %v390 = vpack.c.b16 %v371, %v370
        %v391 = vpack.c.b16 %v373, %v372
        %v392 = vpack.c.b16 %v375, %v374
        %v393 = vpack.c.b16 %v377, %v376
        %vm394 = vcmask 31744
        %v396 = vsel %vm394, %v378, 0
        %v399 = vsel %vm394, %v379, 0
        %v402 = vsel %vm394, %v380, 0
        %v405 = vsel %vm394, %v381, 0
        %v408 = vsel %vm394, %v382, 0
        %v411 = vsel %vm394, %v383, 0
        %v414 = vsel %vm394, %v384, 0
        %v417 = vsel %vm394, %v385, 0
        %v420 = vsel %vm394, %v386, 0
        %v423 = vsel %vm394, %v387, 0
        %v426 = vsel %vm394, %v388, 0
        %v429 = vsel %vm394, %v389, 0
        %v432 = vsel %vm394, %v390, 0
        %v435 = vsel %vm394, %v391, 0
        %v438 = vsel %vm394, %v392, 0
        %v441 = vsel %vm394, %v393, 0
        %vm443 = vcmask 1041408
        %v445 = vsel %vm443, %v313, 0
        %447 = vmatprep.subr.bf16.mxu0 0
        %448 = vmatpush1.bf16.msra.mxu0 0
        %449 = vmatprep.subr.bf16.mxu0 0
        %450 = vmatpush1.bf16.msra.mxu0 0
        %451 = vmatprep.subr.bf16.mxu0 0
        %452 = vmatpush1.bf16.msra.mxu0 0
        %453 = vmatprep.subr.bf16.mxu0 0
        %454 = vmatpush1.bf16.msra.mxu0 0
        %455 = vmatprep.subr.bf16.mxu0 0
        %456 = vmatpush1.bf16.msra.mxu0 0
        %457 = vmatprep.subr.bf16.mxu0 0
        %458 = vmatpush1.bf16.msra.mxu0 0
        %459 = vmatprep.subr.bf16.mxu0 0
        %460 = vmatpush1.bf16.msra.mxu0 0
        %461 = vmatprep.subr.bf16.mxu0 0
        %462 = vmatpush1.bf16.msra.mxu0 %v445
        %463 = vmatprep.subr.bf16.mxu0 0
        %464 = vmatpush2.bf16.msra.mxu0 0
        %465 = vmatprep.subr.bf16.mxu0 0
        %466 = vmatpush2.bf16.msra.mxu0 0
        %467 = vmatprep.subr.bf16.mxu0 0
        %468 = vmatpush2.bf16.msra.mxu0 0
        %469 = vmatprep.subr.bf16.mxu0 0
        %470 = vmatpush2.bf16.msra.mxu0 0
        %471 = vmatprep.subr.bf16.mxu0 0
        %472 = vmatpush2.bf16.msra.mxu0 0
        %473 = vmatprep.subr.bf16.mxu0 0
        %474 = vmatpush2.bf16.msra.mxu0 0
        %475 = vmatprep.subr.bf16.mxu0 0
        %476 = vmatpush2.bf16.msra.mxu0 0
        %477 = vmatprep.subr.bf16.mxu0 0
        %478 = vmatpush2.bf16.msra.mxu0 0
        %479 = vmatprep.mubr.bf16.mxu0 0
        %480 = vmatmul.mubr.bf16.gmra.mxu0 %v396
        %v481 = vpop.f32.mrf.mxu0
        %v482 = vadd.f32 0.0, %v481
        %v483 = vpop.f32.mrf.mxu0
        %v484 = vpop.f32.mrf.mxu0
        %v485 = vadd.f32 0.0, %v484
        %v486 = vpop.f32.mrf.mxu0
        %487 = vmatprep.mubr.bf16.mxu0 0
        %488 = vmatmul.mubr.bf16.gmra.mxu0 %v399
        %v489 = vpop.f32.mrf.mxu0
        %v490 = vadd.f32 0.0, %v489
        %v491 = vpop.f32.mrf.mxu0
        %v492 = vpop.f32.mrf.mxu0
        %v493 = vadd.f32 0.0, %v492
        %v494 = vpop.f32.mrf.mxu0
        %495 = vmatprep.mubr.bf16.mxu0 0
        %496 = vmatmul.mubr.bf16.gmra.mxu0 %v402
        %v497 = vpop.f32.mrf.mxu0
        %v498 = vadd.f32 0.0, %v497
        %v499 = vpop.f32.mrf.mxu0
        %v500 = vpop.f32.mrf.mxu0
        %v501 = vadd.f32 0.0, %v500
        %v502 = vpop.f32.mrf.mxu0
        %503 = vmatprep.mubr.bf16.mxu0 0
        %504 = vmatmul.mubr.bf16.gmra.mxu0 %v405
        %v505 = vpop.f32.mrf.mxu0
        %v506 = vadd.f32 0.0, %v505
        %v507 = vpop.f32.mrf.mxu0
        %v508 = vpop.f32.mrf.mxu0
        %v509 = vadd.f32 0.0, %v508
        %v510 = vpop.f32.mrf.mxu0
        %511 = vmatprep.mubr.bf16.mxu0 0
        %512 = vmatmul.mubr.bf16.gmra.mxu0 %v408
        %v513 = vpop.f32.mrf.mxu0
        %v514 = vadd.f32 0.0, %v513
        %v515 = vpop.f32.mrf.mxu0
        %v516 = vpop.f32.mrf.mxu0
        %v517 = vadd.f32 0.0, %v516
        %v518 = vpop.f32.mrf.mxu0
        %519 = vmatprep.mubr.bf16.mxu0 0
        %520 = vmatmul.mubr.bf16.gmra.mxu0 %v411
        %v521 = vpop.f32.mrf.mxu0
        %v522 = vadd.f32 0.0, %v521
        %v523 = vpop.f32.mrf.mxu0
        %v524 = vpop.f32.mrf.mxu0
        %v525 = vadd.f32 0.0, %v524
        %v526 = vpop.f32.mrf.mxu0
        %527 = vmatprep.mubr.bf16.mxu0 0
        %528 = vmatmul.mubr.bf16.gmra.mxu0 %v414
        %v529 = vpop.f32.mrf.mxu0
        %v530 = vadd.f32 0.0, %v529
        %v531 = vpop.f32.mrf.mxu0
        %v532 = vpop.f32.mrf.mxu0
        %v533 = vadd.f32 0.0, %v532
        %v534 = vpop.f32.mrf.mxu0
        %535 = vmatprep.mubr.bf16.mxu0 0
        %536 = vmatmul.mubr.bf16.gmra.mxu0 %v417
        %v537 = vpop.f32.mrf.mxu0
        %v538 = vadd.f32 0.0, %v537
        %v539 = vpop.f32.mrf.mxu0
        %v540 = vpop.f32.mrf.mxu0
        %v541 = vadd.f32 0.0, %v540
        %v542 = vpop.f32.mrf.mxu0
        %543 = vmatprep.mubr.bf16.mxu0 0
        %544 = vmatmul.mubr.bf16.gmra.mxu0 %v420
        %v545 = vpop.f32.mrf.mxu0
        %v546 = vadd.f32 0.0, %v545
        %v547 = vpop.f32.mrf.mxu0
        %v548 = vpop.f32.mrf.mxu0
        %v549 = vadd.f32 0.0, %v548
        %v550 = vpop.f32.mrf.mxu0
        %551 = vmatprep.mubr.bf16.mxu0 0
        %552 = vmatmul.mubr.bf16.gmra.mxu0 %v423
        %v553 = vpop.f32.mrf.mxu0
        %v554 = vadd.f32 0.0, %v553
        %v555 = vpop.f32.mrf.mxu0
        %v556 = vpop.f32.mrf.mxu0
        %v557 = vadd.f32 0.0, %v556
        %v558 = vpop.f32.mrf.mxu0
        %559 = vmatprep.mubr.bf16.mxu0 0
        %560 = vmatmul.mubr.bf16.gmra.mxu0 %v426
        %v561 = vpop.f32.mrf.mxu0
        %v562 = vadd.f32 0.0, %v561
        %v563 = vpop.f32.mrf.mxu0
        %v564 = vpop.f32.mrf.mxu0
        %v565 = vadd.f32 0.0, %v564
        %v566 = vpop.f32.mrf.mxu0
        %567 = vmatprep.mubr.bf16.mxu0 0
        %568 = vmatmul.mubr.bf16.gmra.mxu0 %v429
        %v569 = vpop.f32.mrf.mxu0
        %v570 = vadd.f32 0.0, %v569
        %v571 = vpop.f32.mrf.mxu0
        %v572 = vpop.f32.mrf.mxu0
        %v573 = vadd.f32 0.0, %v572
        %v574 = vpop.f32.mrf.mxu0
        %575 = vmatprep.mubr.bf16.mxu0 0
        %576 = vmatmul.mubr.bf16.gmra.mxu0 %v432
        %v577 = vpop.f32.mrf.mxu0
        %v578 = vadd.f32 0.0, %v577
        %v579 = vpop.f32.mrf.mxu0
        %v580 = vpop.f32.mrf.mxu0
        %v581 = vadd.f32 0.0, %v580
        %v582 = vpop.f32.mrf.mxu0
        %583 = vmatprep.mubr.bf16.mxu0 0
        %584 = vmatmul.mubr.bf16.gmra.mxu0 %v435
        %v585 = vpop.f32.mrf.mxu0
        %v586 = vadd.f32 0.0, %v585
        %v587 = vpop.f32.mrf.mxu0
        %v588 = vpop.f32.mrf.mxu0
        %v589 = vadd.f32 0.0, %v588
        %v590 = vpop.f32.mrf.mxu0
        %591 = vmatprep.mubr.bf16.mxu0 0
        %592 = vmatmul.mubr.bf16.gmra.mxu0 %v438
        %v593 = vpop.f32.mrf.mxu0
        %v594 = vadd.f32 0.0, %v593
        %v595 = vpop.f32.mrf.mxu0
        %v596 = vpop.f32.mrf.mxu0
        %v597 = vadd.f32 0.0, %v596
        %v598 = vpop.f32.mrf.mxu0
        %599 = vmatprep.mubr.bf16.mxu0 0
        %600 = vmatmul.mubr.bf16.gmra.mxu0 %v441
        %v601 = vpop.f32.mrf.mxu0
        %v602 = vadd.f32 0.0, %v601
        %v603 = vpop.f32.mrf.mxu0
        %v604 = vpop.f32.mrf.mxu0
        %v605 = vadd.f32 0.0, %v604
        %v606 = vpop.f32.mrf.mxu0
        %607 = vdwg.mxu0
        %608 = vst.msk [vmem:[%s279] sm:$0xff] %vm394, %v482
        %609 = vst.msk [vmem:[%s279 + $0x8] sm:$0xff] %vm394, %v485
        %610 = vst.msk [vmem:[%s279 + $0x10] sm:$0xff] %vm394, %v490
        %611 = vst.msk [vmem:[%s279 + $0x18] sm:$0xff] %vm394, %v493
        %612 = vst.msk [vmem:[%s279 + $0x20] sm:$0xff] %vm394, %v498
        %613 = vst.msk [vmem:[%s279 + $0x28] sm:$0xff] %vm394, %v501
        %614 = vst.msk [vmem:[%s279 + $0x30] sm:$0xff] %vm394, %v506
        %615 = vst.msk [vmem:[%s279 + $0x38] sm:$0xff] %vm394, %v509
        %616 = vst.msk [vmem:[%s279 + $0x40] sm:$0xff] %vm394, %v514
        %617 = vst.msk [vmem:[%s279 + $0x48] sm:$0xff] %vm394, %v517
        %618 = vst.msk [vmem:[%s279 + $0x50] sm:$0xff] %vm394, %v522
        %619 = vst.msk [vmem:[%s279 + $0x58] sm:$0xff] %vm394, %v525
        %620 = vst.msk [vmem:[%s279 + $0x60] sm:$0xff] %vm394, %v530
        %621 = vst.msk [vmem:[%s279 + $0x68] sm:$0xff] %vm394, %v533
        %622 = vst.msk [vmem:[%s279 + $0x70] sm:$0xff] %vm394, %v538
        %623 = vst.msk [vmem:[%s279 + $0x78] sm:$0xff] %vm394, %v541
        %624 = vst.msk [vmem:[%s279 + $0x80] sm:$0xff] %vm394, %v546
        %625 = vst.msk [vmem:[%s279 + $0x88] sm:$0xff] %vm394, %v549
        %626 = vst.msk [vmem:[%s279 + $0x90] sm:$0xff] %vm394, %v554
        %627 = vst.msk [vmem:[%s279 + $0x98] sm:$0xff] %vm394, %v557
        %628 = vst.msk [vmem:[%s279 + $0xa0] sm:$0xff] %vm394, %v562
        %629 = vst.msk [vmem:[%s279 + $0xa8] sm:$0xff] %vm394, %v565
        %630 = vst.msk [vmem:[%s279 + $0xb0] sm:$0xff] %vm394, %v570
        %631 = vst.msk [vmem:[%s279 + $0xb8] sm:$0xff] %vm394, %v573
        %632 = vst.msk [vmem:[%s279 + $0xc0] sm:$0xff] %vm394, %v578
        %633 = vst.msk [vmem:[%s279 + $0xc8] sm:$0xff] %vm394, %v581
        %634 = vst.msk [vmem:[%s279 + $0xd0] sm:$0xff] %vm394, %v586
        %635 = vst.msk [vmem:[%s279 + $0xd8] sm:$0xff] %vm394, %v589
        %636 = vst.msk [vmem:[%s279 + $0xe0] sm:$0xff] %vm394, %v594
        %637 = vst.msk [vmem:[%s279 + $0xe8] sm:$0xff] %vm394, %v597
        %638 = vst.msk [vmem:[%s279 + $0xf0] sm:$0xff] %vm394, %v602
        %639 = vst.msk [vmem:[%s279 + $0xf8] sm:$0xff] %vm394, %v605
        %v640 = vsel %vm394, %v482, 0.0
        %v641 = vsel %vm394, %v485, 0.0
        %v642 = vadd.f32 %v640, %v641
        %v643 = vsel %vm394, %v490, 0.0
        %v644 = vadd.f32 %v642, %v643
        %v645 = vsel %vm394, %v493, 0.0
        %v646 = vadd.f32 %v644, %v645
        %v647 = vsel %vm394, %v498, 0.0
        %v648 = vadd.f32 %v646, %v647
        %v649 = vsel %vm394, %v501, 0.0
        %v650 = vadd.f32 %v648, %v649
        %v651 = vsel %vm394, %v506, 0.0
        %v652 = vadd.f32 %v650, %v651
        %v653 = vsel %vm394, %v509, 0.0
        %v654 = vadd.f32 %v652, %v653
        %v655 = vsel %vm394, %v514, 0.0
        %v656 = vadd.f32 %v654, %v655
        %v657 = vsel %vm394, %v517, 0.0
        %v658 = vadd.f32 %v656, %v657
        %v659 = vsel %vm394, %v522, 0.0
        %v660 = vadd.f32 %v658, %v659
        %v661 = vsel %vm394, %v525, 0.0
        %v662 = vadd.f32 %v660, %v661
        %v663 = vsel %vm394, %v530, 0.0
        %v664 = vadd.f32 %v662, %v663
        %v665 = vsel %vm394, %v533, 0.0
        %v666 = vadd.f32 %v664, %v665
        %v667 = vsel %vm394, %v538, 0.0
        %v668 = vadd.f32 %v666, %v667
        %v669 = vsel %vm394, %v541, 0.0
        %v670 = vadd.f32 %v668, %v669
        %v671 = vsel %vm394, %v546, 0.0
        %v672 = vadd.f32 %v670, %v671
        %v673 = vsel %vm394, %v549, 0.0
        %v674 = vadd.f32 %v672, %v673
        %v675 = vsel %vm394, %v554, 0.0
        %v676 = vadd.f32 %v674, %v675
        %v677 = vsel %vm394, %v557, 0.0
        %v678 = vadd.f32 %v676, %v677
        %v679 = vsel %vm394, %v562, 0.0
        %v680 = vadd.f32 %v678, %v679
        %v681 = vsel %vm394, %v565, 0.0
        %v682 = vadd.f32 %v680, %v681
        %v683 = vsel %vm394, %v570, 0.0
        %v684 = vadd.f32 %v682, %v683
        %v685 = vsel %vm394, %v573, 0.0
        %v686 = vadd.f32 %v684, %v685
        %v687 = vsel %vm394, %v578, 0.0
        %v688 = vadd.f32 %v686, %v687
        %v689 = vsel %vm394, %v581, 0.0
        %v690 = vadd.f32 %v688, %v689
        %v691 = vsel %vm394, %v586, 0.0
        %v692 = vadd.f32 %v690, %v691
        %v693 = vsel %vm394, %v589, 0.0
        %v694 = vadd.f32 %v692, %v693
        %v695 = vsel %vm394, %v594, 0.0
        %v696 = vadd.f32 %v694, %v695
        %v697 = vsel %vm394, %v597, 0.0
        %v698 = vadd.f32 %v696, %v697
        %v699 = vsel %vm394, %v602, 0.0
        %v700 = vadd.f32 %v698, %v699
        %v701 = vsel %vm394, %v605, 0.0
        %v702 = vadd.f32 %v700, %v701
        %v703 = vrot.slane %v702, 4
        %v704 = vadd.f32 %v702, %v703
        %v705 = vrot.slane %v704, 2
        %v706 = vadd.f32 %v704, %v705
        %v707 = vrot.slane %v706, 1
        %v708 = vadd.f32 %v706, %v707
        %v709 = vmul.f32 %v482, %v482
        %v710 = vmul.f32 %v485, %v485
        %v711 = vmul.f32 %v490, %v490
        %v712 = vmul.f32 %v493, %v493
        %v713 = vmul.f32 %v498, %v498
        %v714 = vmul.f32 %v501, %v501
        %v715 = vmul.f32 %v506, %v506
        %v716 = vmul.f32 %v509, %v509
        %v717 = vmul.f32 %v514, %v514
        %v718 = vmul.f32 %v517, %v517
        %v719 = vmul.f32 %v522, %v522
        %v720 = vmul.f32 %v525, %v525
        %v721 = vmul.f32 %v530, %v530
        %v722 = vmul.f32 %v533, %v533
        %v723 = vmul.f32 %v538, %v538
        %v724 = vmul.f32 %v541, %v541
        %v725 = vmul.f32 %v546, %v546
        %v726 = vmul.f32 %v549, %v549
        %v727 = vmul.f32 %v554, %v554
        %v728 = vmul.f32 %v557, %v557
        %v729 = vmul.f32 %v562, %v562
        %v730 = vmul.f32 %v565, %v565
        %v731 = vmul.f32 %v570, %v570
        %v732 = vmul.f32 %v573, %v573
        %v733 = vmul.f32 %v578, %v578
        %v734 = vmul.f32 %v581, %v581
        %v735 = vmul.f32 %v586, %v586
        %v736 = vmul.f32 %v589, %v589
        %v737 = vmul.f32 %v594, %v594
        %v738 = vmul.f32 %v597, %v597
        %v739 = vmul.f32 %v602, %v602
        %v740 = vmul.f32 %v605, %v605
        %v741 = vsel %vm394, %v709, 0.0
        %v742 = vsel %vm394, %v710, 0.0
        %v743 = vadd.f32 %v741, %v742
        %v744 = vsel %vm394, %v711, 0.0
        %v745 = vadd.f32 %v743, %v744
        %v746 = vsel %vm394, %v712, 0.0
        %v747 = vadd.f32 %v745, %v746
        %v748 = vsel %vm394, %v713, 0.0
        %v749 = vadd.f32 %v747, %v748
        %v750 = vsel %vm394, %v714, 0.0
        %v751 = vadd.f32 %v749, %v750
        %v752 = vsel %vm394, %v715, 0.0
        %v753 = vadd.f32 %v751, %v752
        %v754 = vsel %vm394, %v716, 0.0
        %v755 = vadd.f32 %v753, %v754
        %v756 = vsel %vm394, %v717, 0.0
        %v757 = vadd.f32 %v755, %v756
        %v758 = vsel %vm394, %v718, 0.0
        %v759 = vadd.f32 %v757, %v758
        %v760 = vsel %vm394, %v719, 0.0
        %v761 = vadd.f32 %v759, %v760
        %v762 = vsel %vm394, %v720, 0.0
        %v763 = vadd.f32 %v761, %v762
        %v764 = vsel %vm394, %v721, 0.0
        %v765 = vadd.f32 %v763, %v764
        %v766 = vsel %vm394, %v722, 0.0
        %v767 = vadd.f32 %v765, %v766
        %v768 = vsel %vm394, %v723, 0.0
        %v769 = vadd.f32 %v767, %v768
        %v770 = vsel %vm394, %v724, 0.0
        %v771 = vadd.f32 %v769, %v770
        %v772 = vsel %vm394, %v725, 0.0
        %v773 = vadd.f32 %v771, %v772
        %v774 = vsel %vm394, %v726, 0.0
        %v775 = vadd.f32 %v773, %v774
        %v776 = vsel %vm394, %v727, 0.0
        %v777 = vadd.f32 %v775, %v776
        %v778 = vsel %vm394, %v728, 0.0
        %v779 = vadd.f32 %v777, %v778
        %v780 = vsel %vm394, %v729, 0.0
        %v781 = vadd.f32 %v779, %v780
        %v782 = vsel %vm394, %v730, 0.0
        %v783 = vadd.f32 %v781, %v782
        %v784 = vsel %vm394, %v731, 0.0
        %v785 = vadd.f32 %v783, %v784
        %v786 = vsel %vm394, %v732, 0.0
        %v787 = vadd.f32 %v785, %v786
        %v788 = vsel %vm394, %v733, 0.0
        %v789 = vadd.f32 %v787, %v788
        %v790 = vsel %vm394, %v734, 0.0
        %v791 = vadd.f32 %v789, %v790
        %v792 = vsel %vm394, %v735, 0.0
        %v793 = vadd.f32 %v791, %v792
        %v794 = vsel %vm394, %v736, 0.0
        %v795 = vadd.f32 %v793, %v794
        %v796 = vsel %vm394, %v737, 0.0
        %v797 = vadd.f32 %v795, %v796
        %v798 = vsel %vm394, %v738, 0.0
        %v799 = vadd.f32 %v797, %v798
        %v800 = vsel %vm394, %v739, 0.0
        %v801 = vadd.f32 %v799, %v800
        %v802 = vsel %vm394, %v740, 0.0
        %v803 = vadd.f32 %v801, %v802
        %v804 = vrot.slane %v803, 4
        %v805 = vadd.f32 %v803, %v804
        %v806 = vrot.slane %v805, 2
        %v807 = vadd.f32 %v805, %v806
        %v808 = vrot.slane %v807, 1
        %v809 = vadd.f32 %v807, %v808
        %vm810 = vcmask 1040384
        %v811 = vsel %vm810, %v708, %v809
        %vm812 = vcmask 25600
        %813 = vst.msk [vmem:[%s262] sm:$0x3] %vm812, %v811
        %v814 = vld [vmem:[%s2] sm:$0x3]
        %v816 = vsel %vm443, %v814, 0
        %818 = vmatprep.subr.bf16.mxu0 0
        %819 = vmatpush1.bf16.msra.mxu0 0
        %820 = vmatprep.subr.bf16.mxu0 0
        %821 = vmatpush1.bf16.msra.mxu0 0
        %822 = vmatprep.subr.bf16.mxu0 0
        %823 = vmatpush1.bf16.msra.mxu0 0
        %824 = vmatprep.subr.bf16.mxu0 0
        %825 = vmatpush1.bf16.msra.mxu0 0
        %826 = vmatprep.subr.bf16.mxu0 0
        %827 = vmatpush1.bf16.msra.mxu0 0
        %828 = vmatprep.subr.bf16.mxu0 0
        %829 = vmatpush1.bf16.msra.mxu0 0
        %830 = vmatprep.subr.bf16.mxu0 0
        %831 = vmatpush1.bf16.msra.mxu0 0
        %832 = vmatprep.subr.bf16.mxu0 0
        %833 = vmatpush1.bf16.msra.mxu0 %v816
        %834 = vmatprep.subr.bf16.mxu0 0
        %835 = vmatpush2.bf16.msra.mxu0 0
        %836 = vmatprep.subr.bf16.mxu0 0
        %837 = vmatpush2.bf16.msra.mxu0 0
        %838 = vmatprep.subr.bf16.mxu0 0
        %839 = vmatpush2.bf16.msra.mxu0 0
        %840 = vmatprep.subr.bf16.mxu0 0
        %841 = vmatpush2.bf16.msra.mxu0 0
        %842 = vmatprep.subr.bf16.mxu0 0
        %843 = vmatpush2.bf16.msra.mxu0 0
        %844 = vmatprep.subr.bf16.mxu0 0
        %845 = vmatpush2.bf16.msra.mxu0 0
        %846 = vmatprep.subr.bf16.mxu0 0
        %847 = vmatpush2.bf16.msra.mxu0 0
        %848 = vmatprep.subr.bf16.mxu0 0
        %849 = vmatpush2.bf16.msra.mxu0 0
        %850 = vmatprep.mubr.bf16.mxu0 0
        %851 = vmatmul.mubr.bf16.gmra.mxu0 %v396
        %v852 = vpop.f32.mrf.mxu0
        %v853 = vadd.f32 0.0, %v852
        %v854 = vpop.f32.mrf.mxu0
        %v855 = vpop.f32.mrf.mxu0
        %v856 = vadd.f32 0.0, %v855
        %v857 = vpop.f32.mrf.mxu0
        %858 = vmatprep.mubr.bf16.mxu0 0
        %859 = vmatmul.mubr.bf16.gmra.mxu0 %v399
        %v860 = vpop.f32.mrf.mxu0
        %v861 = vadd.f32 0.0, %v860
        %v862 = vpop.f32.mrf.mxu0
        %v863 = vpop.f32.mrf.mxu0
        %v864 = vadd.f32 0.0, %v863
        %v865 = vpop.f32.mrf.mxu0
        %866 = vmatprep.mubr.bf16.mxu0 0
        %867 = vmatmul.mubr.bf16.gmra.mxu0 %v402
        %v868 = vpop.f32.mrf.mxu0
        %v869 = vadd.f32 0.0, %v868
        %v870 = vpop.f32.mrf.mxu0
        %v871 = vpop.f32.mrf.mxu0
        %v872 = vadd.f32 0.0, %v871
        %v873 = vpop.f32.mrf.mxu0
        %874 = vmatprep.mubr.bf16.mxu0 0
        %875 = vmatmul.mubr.bf16.gmra.mxu0 %v405
        %v876 = vpop.f32.mrf.mxu0
        %v877 = vadd.f32 0.0, %v876
        %v878 = vpop.f32.mrf.mxu0
        %v879 = vpop.f32.mrf.mxu0
        %v880 = vadd.f32 0.0, %v879
        %v881 = vpop.f32.mrf.mxu0
        %882 = vmatprep.mubr.bf16.mxu0 0
        %883 = vmatmul.mubr.bf16.gmra.mxu0 %v408
        %v884 = vpop.f32.mrf.mxu0
        %v885 = vadd.f32 0.0, %v884
        %v886 = vpop.f32.mrf.mxu0
        %v887 = vpop.f32.mrf.mxu0
        %v888 = vadd.f32 0.0, %v887
        %v889 = vpop.f32.mrf.mxu0
        %890 = vmatprep.mubr.bf16.mxu0 0
        %891 = vmatmul.mubr.bf16.gmra.mxu0 %v411
        %v892 = vpop.f32.mrf.mxu0
        %v893 = vadd.f32 0.0, %v892
        %v894 = vpop.f32.mrf.mxu0
        %v895 = vpop.f32.mrf.mxu0
        %v896 = vadd.f32 0.0, %v895
        %v897 = vpop.f32.mrf.mxu0
        %898 = vmatprep.mubr.bf16.mxu0 0
        %899 = vmatmul.mubr.bf16.gmra.mxu0 %v414
        %v900 = vpop.f32.mrf.mxu0
        %v901 = vadd.f32 0.0, %v900
        %v902 = vpop.f32.mrf.mxu0
        %v903 = vpop.f32.mrf.mxu0
        %v904 = vadd.f32 0.0, %v903
        %v905 = vpop.f32.mrf.mxu0
        %906 = vmatprep.mubr.bf16.mxu0 0
        %907 = vmatmul.mubr.bf16.gmra.mxu0 %v417
        %v908 = vpop.f32.mrf.mxu0
        %v909 = vadd.f32 0.0, %v908
        %v910 = vpop.f32.mrf.mxu0
        %v911 = vpop.f32.mrf.mxu0
        %v912 = vadd.f32 0.0, %v911
        %v913 = vpop.f32.mrf.mxu0
        %914 = vmatprep.mubr.bf16.mxu0 0
        %915 = vmatmul.mubr.bf16.gmra.mxu0 %v420
        %v916 = vpop.f32.mrf.mxu0
        %v917 = vadd.f32 0.0, %v916
        %v918 = vpop.f32.mrf.mxu0
        %v919 = vpop.f32.mrf.mxu0
        %v920 = vadd.f32 0.0, %v919
        %v921 = vpop.f32.mrf.mxu0
        %922 = vmatprep.mubr.bf16.mxu0 0
        %923 = vmatmul.mubr.bf16.gmra.mxu0 %v423
        %v924 = vpop.f32.mrf.mxu0
        %v925 = vadd.f32 0.0, %v924
        %v926 = vpop.f32.mrf.mxu0
        %v927 = vpop.f32.mrf.mxu0
        %v928 = vadd.f32 0.0, %v927
        %v929 = vpop.f32.mrf.mxu0
        %930 = vmatprep.mubr.bf16.mxu0 0
        %931 = vmatmul.mubr.bf16.gmra.mxu0 %v426
        %v932 = vpop.f32.mrf.mxu0
        %v933 = vadd.f32 0.0, %v932
        %v934 = vpop.f32.mrf.mxu0
        %v935 = vpop.f32.mrf.mxu0
        %v936 = vadd.f32 0.0, %v935
        %v937 = vpop.f32.mrf.mxu0
        %938 = vmatprep.mubr.bf16.mxu0 0
        %939 = vmatmul.mubr.bf16.gmra.mxu0 %v429
        %v940 = vpop.f32.mrf.mxu0
        %v941 = vadd.f32 0.0, %v940
        %v942 = vpop.f32.mrf.mxu0
        %v943 = vpop.f32.mrf.mxu0
        %v944 = vadd.f32 0.0, %v943
        %v945 = vpop.f32.mrf.mxu0
        %946 = vmatprep.mubr.bf16.mxu0 0
        %947 = vmatmul.mubr.bf16.gmra.mxu0 %v432
        %v948 = vpop.f32.mrf.mxu0
        %v949 = vadd.f32 0.0, %v948
        %v950 = vpop.f32.mrf.mxu0
        %v951 = vpop.f32.mrf.mxu0
        %v952 = vadd.f32 0.0, %v951
        %v953 = vpop.f32.mrf.mxu0
        %954 = vmatprep.mubr.bf16.mxu0 0
        %955 = vmatmul.mubr.bf16.gmra.mxu0 %v435
        %v956 = vpop.f32.mrf.mxu0
        %v957 = vadd.f32 0.0, %v956
        %v958 = vpop.f32.mrf.mxu0
        %v959 = vpop.f32.mrf.mxu0
        %v960 = vadd.f32 0.0, %v959
        %v961 = vpop.f32.mrf.mxu0
        %962 = vmatprep.mubr.bf16.mxu0 0
        %963 = vmatmul.mubr.bf16.gmra.mxu0 %v438
        %v964 = vpop.f32.mrf.mxu0
        %v965 = vadd.f32 0.0, %v964
        %v966 = vpop.f32.mrf.mxu0
        %v967 = vpop.f32.mrf.mxu0
        %v968 = vadd.f32 0.0, %v967
        %v969 = vpop.f32.mrf.mxu0
        %970 = vmatprep.mubr.bf16.mxu0 0
        %971 = vmatmul.mubr.bf16.gmra.mxu0 %v441
        %v972 = vpop.f32.mrf.mxu0
        %v973 = vadd.f32 0.0, %v972
        %v974 = vpop.f32.mrf.mxu0
        %v975 = vpop.f32.mrf.mxu0
        %v976 = vadd.f32 0.0, %v975
        %v977 = vpop.f32.mrf.mxu0
        %978 = vdwg.mxu0
        %vm979 = vcmask 130048
        %980 = vst.msk [vmem:[%s255] sm:$0xff] %vm979, %v853
        %981 = vst.msk [vmem:[%s255 + $0x8] sm:$0xff] %vm979, %v856
        %982 = vst.msk [vmem:[%s255 + $0x10] sm:$0xff] %vm979, %v861
        %983 = vst.msk [vmem:[%s255 + $0x18] sm:$0xff] %vm979, %v864
        %984 = vst.msk [vmem:[%s255 + $0x20] sm:$0xff] %vm979, %v869
        %985 = vst.msk [vmem:[%s255 + $0x28] sm:$0xff] %vm979, %v872
        %986 = vst.msk [vmem:[%s255 + $0x30] sm:$0xff] %vm979, %v877
        %987 = vst.msk [vmem:[%s255 + $0x38] sm:$0xff] %vm979, %v880
        %988 = vst.msk [vmem:[%s255 + $0x40] sm:$0xff] %vm979, %v885
        %989 = vst.msk [vmem:[%s255 + $0x48] sm:$0xff] %vm979, %v888
        %990 = vst.msk [vmem:[%s255 + $0x50] sm:$0xff] %vm979, %v893
        %991 = vst.msk [vmem:[%s255 + $0x58] sm:$0xff] %vm979, %v896
        %992 = vst.msk [vmem:[%s255 + $0x60] sm:$0xff] %vm979, %v901
        %993 = vst.msk [vmem:[%s255 + $0x68] sm:$0xff] %vm979, %v904
        %994 = vst.msk [vmem:[%s255 + $0x70] sm:$0xff] %vm979, %v909
        %995 = vst.msk [vmem:[%s255 + $0x78] sm:$0xff] %vm979, %v912
        %996 = vst.msk [vmem:[%s255 + $0x80] sm:$0xff] %vm979, %v917
        %997 = vst.msk [vmem:[%s255 + $0x88] sm:$0xff] %vm979, %v920
        %998 = vst.msk [vmem:[%s255 + $0x90] sm:$0xff] %vm979, %v925
        %999 = vst.msk [vmem:[%s255 + $0x98] sm:$0xff] %vm979, %v928
        %1000 = vst.msk [vmem:[%s255 + $0xa0] sm:$0xff] %vm979, %v933
        %1001 = vst.msk [vmem:[%s255 + $0xa8] sm:$0xff] %vm979, %v936
        %1002 = vst.msk [vmem:[%s255 + $0xb0] sm:$0xff] %vm979, %v941
        %1003 = vst.msk [vmem:[%s255 + $0xb8] sm:$0xff] %vm979, %v944
        %1004 = vst.msk [vmem:[%s255 + $0xc0] sm:$0xff] %vm979, %v949
        %1005 = vst.msk [vmem:[%s255 + $0xc8] sm:$0xff] %vm979, %v952
        %1006 = vst.msk [vmem:[%s255 + $0xd0] sm:$0xff] %vm979, %v957
        %1007 = vst.msk [vmem:[%s255 + $0xd8] sm:$0xff] %vm979, %v960
        %1008 = vst.msk [vmem:[%s255 + $0xe0] sm:$0xff] %vm979, %v965
        %1009 = vst.msk [vmem:[%s255 + $0xe8] sm:$0xff] %vm979, %v968
        %1010 = vst.msk [vmem:[%s255 + $0xf0] sm:$0xff] %vm979, %v973
        %1011 = vst.msk [vmem:[%s255 + $0xf8] sm:$0xff] %vm979, %v976
        %v1012 = vsel %vm979, %v853, 0.0
        %v1013 = vsel %vm979, %v856, 0.0
        %v1014 = vadd.f32 %v1012, %v1013
        %v1015 = vsel %vm979, %v861, 0.0
        %v1016 = vadd.f32 %v1014, %v1015
        %v1017 = vsel %vm979, %v864, 0.0
        %v1018 = vadd.f32 %v1016, %v1017
        %v1019 = vsel %vm979, %v869, 0.0
        %v1020 = vadd.f32 %v1018, %v1019
        %v1021 = vsel %vm979, %v872, 0.0
        %v1022 = vadd.f32 %v1020, %v1021
        %v1023 = vsel %vm979, %v877, 0.0
        %v1024 = vadd.f32 %v1022, %v1023
        %v1025 = vsel %vm979, %v880, 0.0
        %v1026 = vadd.f32 %v1024, %v1025
        %v1027 = vsel %vm979, %v885, 0.0
        %v1028 = vadd.f32 %v1026, %v1027
        %v1029 = vsel %vm979, %v888, 0.0
        %v1030 = vadd.f32 %v1028, %v1029
        %v1031 = vsel %vm979, %v893, 0.0
        %v1032 = vadd.f32 %v1030, %v1031
        %v1033 = vsel %vm979, %v896, 0.0
        %v1034 = vadd.f32 %v1032, %v1033
        %v1035 = vsel %vm979, %v901, 0.0
        %v1036 = vadd.f32 %v1034, %v1035
        %v1037 = vsel %vm979, %v904, 0.0
        %v1038 = vadd.f32 %v1036, %v1037
        %v1039 = vsel %vm979, %v909, 0.0
        %v1040 = vadd.f32 %v1038, %v1039
        %v1041 = vsel %vm979, %v912, 0.0
        %v1042 = vadd.f32 %v1040, %v1041
        %v1043 = vsel %vm979, %v917, 0.0
        %v1044 = vadd.f32 %v1042, %v1043
        %v1045 = vsel %vm979, %v920, 0.0
        %v1046 = vadd.f32 %v1044, %v1045
        %v1047 = vsel %vm979, %v925, 0.0
        %v1048 = vadd.f32 %v1046, %v1047
        %v1049 = vsel %vm979, %v928, 0.0
        %v1050 = vadd.f32 %v1048, %v1049
        %v1051 = vsel %vm979, %v933, 0.0
        %v1052 = vadd.f32 %v1050, %v1051
        %v1053 = vsel %vm979, %v936, 0.0
        %v1054 = vadd.f32 %v1052, %v1053
        %v1055 = vsel %vm979, %v941, 0.0
        %v1056 = vadd.f32 %v1054, %v1055
        %v1057 = vsel %vm979, %v944, 0.0
        %v1058 = vadd.f32 %v1056, %v1057
        %v1059 = vsel %vm979, %v949, 0.0
        %v1060 = vadd.f32 %v1058, %v1059
        %v1061 = vsel %vm979, %v952, 0.0
        %v1062 = vadd.f32 %v1060, %v1061
        %v1063 = vsel %vm979, %v957, 0.0
        %v1064 = vadd.f32 %v1062, %v1063
        %v1065 = vsel %vm979, %v960, 0.0
        %v1066 = vadd.f32 %v1064, %v1065
        %v1067 = vsel %vm979, %v965, 0.0
        %v1068 = vadd.f32 %v1066, %v1067
        %v1069 = vsel %vm979, %v968, 0.0
        %v1070 = vadd.f32 %v1068, %v1069
        %v1071 = vsel %vm979, %v973, 0.0
        %v1072 = vadd.f32 %v1070, %v1071
        %v1073 = vsel %vm979, %v976, 0.0
        %v1074 = vadd.f32 %v1072, %v1073
        %v1075 = vrot.slane %v1074, 4
        %v1076 = vadd.f32 %v1074, %v1075
        %v1077 = vrot.slane %v1076, 2
        %v1078 = vadd.f32 %v1076, %v1077
        %v1079 = vrot.slane %v1078, 1
        %v1080 = vadd.f32 %v1078, %v1079
        %v1081 = vmul.f32 %v853, %v853
        %v1082 = vmul.f32 %v856, %v856
        %v1083 = vmul.f32 %v861, %v861
        %v1084 = vmul.f32 %v864, %v864
        %v1085 = vmul.f32 %v869, %v869
        %v1086 = vmul.f32 %v872, %v872
        %v1087 = vmul.f32 %v877, %v877
        %v1088 = vmul.f32 %v880, %v880
        %v1089 = vmul.f32 %v885, %v885
        %v1090 = vmul.f32 %v888, %v888
        %v1091 = vmul.f32 %v893, %v893
        %v1092 = vmul.f32 %v896, %v896
        %v1093 = vmul.f32 %v901, %v901
        %v1094 = vmul.f32 %v904, %v904
        %v1095 = vmul.f32 %v909, %v909
        %v1096 = vmul.f32 %v912, %v912
        %v1097 = vmul.f32 %v917, %v917
        %v1098 = vmul.f32 %v920, %v920
        %v1099 = vmul.f32 %v925, %v925
        %v1100 = vmul.f32 %v928, %v928
        %v1101 = vmul.f32 %v933, %v933
        %v1102 = vmul.f32 %v936, %v936
        %v1103 = vmul.f32 %v941, %v941
        %v1104 = vmul.f32 %v944, %v944
        %v1105 = vmul.f32 %v949, %v949
        %v1106 = vmul.f32 %v952, %v952
        %v1107 = vmul.f32 %v957, %v957
        %v1108 = vmul.f32 %v960, %v960
        %v1109 = vmul.f32 %v965, %v965
        %v1110 = vmul.f32 %v968, %v968
        %v1111 = vmul.f32 %v973, %v973
        %v1112 = vmul.f32 %v976, %v976
        %v1113 = vsel %vm979, %v1081, 0.0
        %v1114 = vsel %vm979, %v1082, 0.0
        %v1115 = vadd.f32 %v1113, %v1114
        %v1116 = vsel %vm979, %v1083, 0.0
        %v1117 = vadd.f32 %v1115, %v1116
        %v1118 = vsel %vm979, %v1084, 0.0
        %v1119 = vadd.f32 %v1117, %v1118
        %v1120 = vsel %vm979, %v1085, 0.0
        %v1121 = vadd.f32 %v1119, %v1120
        %v1122 = vsel %vm979, %v1086, 0.0
        %v1123 = vadd.f32 %v1121, %v1122
        %v1124 = vsel %vm979, %v1087, 0.0
        %v1125 = vadd.f32 %v1123, %v1124
        %v1126 = vsel %vm979, %v1088, 0.0
        %v1127 = vadd.f32 %v1125, %v1126
        %v1128 = vsel %vm979, %v1089, 0.0
        %v1129 = vadd.f32 %v1127, %v1128
        %v1130 = vsel %vm979, %v1090, 0.0
        %v1131 = vadd.f32 %v1129, %v1130
        %v1132 = vsel %vm979, %v1091, 0.0
        %v1133 = vadd.f32 %v1131, %v1132
        %v1134 = vsel %vm979, %v1092, 0.0
        %v1135 = vadd.f32 %v1133, %v1134
        %v1136 = vsel %vm979, %v1093, 0.0
        %v1137 = vadd.f32 %v1135, %v1136
        %v1138 = vsel %vm979, %v1094, 0.0
        %v1139 = vadd.f32 %v1137, %v1138
        %v1140 = vsel %vm979, %v1095, 0.0
        %v1141 = vadd.f32 %v1139, %v1140
        %v1142 = vsel %vm979, %v1096, 0.0
        %v1143 = vadd.f32 %v1141, %v1142
        %v1144 = vsel %vm979, %v1097, 0.0
        %v1145 = vadd.f32 %v1143, %v1144
        %v1146 = vsel %vm979, %v1098, 0.0
        %v1147 = vadd.f32 %v1145, %v1146
        %v1148 = vsel %vm979, %v1099, 0.0
        %v1149 = vadd.f32 %v1147, %v1148
        %v1150 = vsel %vm979, %v1100, 0.0
        %v1151 = vadd.f32 %v1149, %v1150
        %v1152 = vsel %vm979, %v1101, 0.0
        %v1153 = vadd.f32 %v1151, %v1152
        %v1154 = vsel %vm979, %v1102, 0.0
        %v1155 = vadd.f32 %v1153, %v1154
        %v1156 = vsel %vm979, %v1103, 0.0
        %v1157 = vadd.f32 %v1155, %v1156
        %v1158 = vsel %vm979, %v1104, 0.0
        %v1159 = vadd.f32 %v1157, %v1158
        %v1160 = vsel %vm979, %v1105, 0.0
        %v1161 = vadd.f32 %v1159, %v1160
        %v1162 = vsel %vm979, %v1106, 0.0
        %v1163 = vadd.f32 %v1161, %v1162
        %v1164 = vsel %vm979, %v1107, 0.0
        %v1165 = vadd.f32 %v1163, %v1164
        %v1166 = vsel %vm979, %v1108, 0.0
        %v1167 = vadd.f32 %v1165, %v1166
        %v1168 = vsel %vm979, %v1109, 0.0
        %v1169 = vadd.f32 %v1167, %v1168
        %v1170 = vsel %vm979, %v1110, 0.0
        %v1171 = vadd.f32 %v1169, %v1170
        %v1172 = vsel %vm979, %v1111, 0.0
        %v1173 = vadd.f32 %v1171, %v1172
        %v1174 = vsel %vm979, %v1112, 0.0
        %v1175 = vadd.f32 %v1173, %v1174
        %v1176 = vrot.slane %v1175, 4
        %v1177 = vadd.f32 %v1175, %v1176
        %v1178 = vrot.slane %v1177, 2
        %v1179 = vadd.f32 %v1177, %v1178
        %v1180 = vrot.slane %v1179, 1
        %v1181 = vadd.f32 %v1179, %v1180
        %v1182 = vsel %vm810, %v1080, %v1181
        %vm1183 = vcmask 123904
        %1184 = vst.msk [vmem:[%s269] sm:$0x3] %vm1183, %v1182
        %p1185 = scmp.lt.s32.totalorder %s24, 1
        %s1186 = scalar_select %p1185, %s24, 1
        %s1187 = smul.addr %s1186, 32
        %s1188 = smul.addr %s1187, 8
        %s1189 = scalar_lea.vmem %s3, %s1188
        %s1190 = sand.u32 %s126, 1
        %s1191 = scalar_lea.sflag [#allocation3], %s1190
        %s1192 = sand.u32 %s126, 1
        %s1193 = smul.addr %s1192, 256
        %s1194 = scalar_lea.vmem [#allocation2], %s1193
        %s1195 = sand.u32 %s24, 1
        %s1196 = scalar_lea.sflag [#allocation5], %s1195
        %s1197 = sand.u32 %s152, 1
        %s1198 = smul.addr %s1197, 2
        %s1199 = scalar_lea.vmem [#allocation4], %s1198
        %s1200 = sand.u32 %s24, 1
        %s1201 = scalar_lea.sflag [#allocation5], %s1200
        %s1202 = sand.u32 %s178, 1
        %s1203 = smul.addr %s1202, 2
        %s1204 = scalar_lea.vmem [#allocation6], %s1203
        // Predicated region
        $region33: #{tpu_custom_call.1} parent=31 // pred_check
          %p1205 = pneg %p110
        $region34: #{tpu_custom_call.1} parent=31 // pred_check_branch
          %1207 = sbr.rel (%p1205) target = $region36
        $region35: #{tpu_custom_call.1} parent=31 // pred_region
          _
        $region36: #{tpu_custom_call.1} parent=31 // pred_fallthru
          _
        // Predicated region
        $region37: #{tpu_custom_call.1} parent=31 // pred_check
          %p1208 = pneg %p136
        $region38: #{tpu_custom_call.1} parent=31 // pred_check_branch
          %1210 = sbr.rel (%p1208) target = $region40
        $region39: #{tpu_custom_call.1} parent=31 // pred_region
          %s1212 = ssub.s32 4096, 4096
          %1213 = vsyncadd %s1191, %s1212
          %s1214 = smul.addr %s24, 32
          %s1215 = smul.addr %s1214, 128
          %s1216 = scalar_lea.hbm %s4, %s1215
          %s1217 = sshll.u32 %s1194, 4
          %s1218 = int_to_ptr.vmem [resolvable:$true] %s1217
          %1223 = dma.vmem_to_hbm [thread:$0]  %s1218, 4096, %s1216, %s1191, 128, 128, 8
        $region40: #{tpu_custom_call.1} parent=31 // pred_fallthru
          _
        // Predicated region
        $region41: #{tpu_custom_call.1} parent=31 // pred_check
          %p1224 = pneg %p162
        $region42: #{tpu_custom_call.1} parent=31 // pred_check_branch
          %1226 = sbr.rel (%p1224) target = $region44
        $region43: #{tpu_custom_call.1} parent=31 // pred_region
          %s1228 = ssub.s32 32, 32
          %1229 = vsyncadd %s1196, %s1228
          %s1230 = smul.addr %s24, 32
          %s1231 = scalar_lea.hbm %s5, %s1230
          %s1233 = sshll.u32 %s1199, 4
          %s1234 = int_to_ptr.vmem [resolvable:$true] %s1233
          %1236 = dma.vmem_to_hbm [thread:$0]  %s1234, 32, %s1231, %s1196
        $region44: #{tpu_custom_call.1} parent=31 // pred_fallthru
          _
        // Predicated region
        $region45: #{tpu_custom_call.1} parent=31 // pred_check
          %p1237 = pneg %p188
        $region46: #{tpu_custom_call.1} parent=31 // pred_check_branch
          %1239 = sbr.rel (%p1237) target = $region48
        $region47: #{tpu_custom_call.1} parent=31 // pred_region
          %s1241 = ssub.s32 32, 32
          %1242 = vsyncadd %s1201, %s1241
          %s1243 = smul.addr %s24, 32
          %s1244 = scalar_lea.hbm %s6, %s1243
          %s1246 = sshll.u32 %s1204, 4
          %s1247 = int_to_ptr.vmem [resolvable:$true] %s1246
          %1249 = dma.vmem_to_hbm [thread:$0]  %s1247, 32, %s1244, %s1201
        $region48: #{tpu_custom_call.1} parent=31 // pred_fallthru
          _
      $region32: #{tpu_custom_call.1} parent=5 // pred_fallthru
        _
      %p1250 = scmp.le.s32.totalorder 2, %s19
      // Predicated region
      $region49: #{tpu_custom_call.1} parent=5 // pred_check
        %p1251 = pneg %p1250
      $region50: #{tpu_custom_call.1} parent=5 // pred_check_branch
        %1253 = sbr.rel (%p1251) target = $region52
      $region51: #{tpu_custom_call.1} parent=5 // pred_region
        %s1254 = ssub.s32 %s19, 2
        // Predicated region
        $region53: #{tpu_custom_call.1} parent=51 // pred_check
          %p1255 = pneg %p116
        $region54: #{tpu_custom_call.1} parent=51 // pred_check_branch
          %1257 = sbr.rel (%p1255) target = $region56
        $region55: #{tpu_custom_call.1} parent=51 // pred_region
          %p1258 = scmp.lt.s32.totalorder %s25, 1
          %s1259 = scalar_select %p1258, %s25, 1
          %s1260 = smul.addr %s1259, 32
          %s1261 = smul.addr %s1260, 8
          %s1262 = scalar_lea.vmem %s3, %s1261
        $region56: #{tpu_custom_call.1} parent=51 // pred_fallthru
          _
        // Predicated region
        $region57: #{tpu_custom_call.1} parent=51 // pred_check
          %p1263 = pneg %p142
        $region58: #{tpu_custom_call.1} parent=51 // pred_check_branch
          %1265 = sbr.rel (%p1263) target = $region60
        $region59: #{tpu_custom_call.1} parent=51 // pred_region
          %s1266 = sand.u32 %s127, 1
          %s1267 = scalar_lea.sflag [#allocation3], %s1266
          %s1268 = sand.u32 %s127, 1
          %s1269 = smul.addr %s1268, 256
          %s1270 = scalar_lea.vmem [#allocation2], %s1269
          %1271 = dma.done %s1267, 4096
        $region60: #{tpu_custom_call.1} parent=51 // pred_fallthru
          _
        // Predicated region
        $region61: #{tpu_custom_call.1} parent=51 // pred_check
          %p1272 = pneg %p168
        $region62: #{tpu_custom_call.1} parent=51 // pred_check_branch
          %1274 = sbr.rel (%p1272) target = $region64
        $region63: #{tpu_custom_call.1} parent=51 // pred_region
          %s1275 = sand.u32 %s25, 1
          %s1276 = scalar_lea.sflag [#allocation5], %s1275
          %s1277 = sand.u32 %s153, 1
          %s1278 = smul.addr %s1277, 2
          %s1279 = scalar_lea.vmem [#allocation4], %s1278
          %1280 = dma.done %s1276, 32
        $region64: #{tpu_custom_call.1} parent=51 // pred_fallthru
          _
        // Predicated region
        $region65: #{tpu_custom_call.1} parent=51 // pred_check
          %p1281 = pneg %p194
        $region66: #{tpu_custom_call.1} parent=51 // pred_check_branch
          %1283 = sbr.rel (%p1281) target = $region68
        $region67: #{tpu_custom_call.1} parent=51 // pred_region
          %s1284 = sand.u32 %s25, 1
          %s1285 = scalar_lea.sflag [#allocation5], %s1284
          %s1286 = sand.u32 %s179, 1
          %s1287 = smul.addr %s1286, 2
          %s1288 = scalar_lea.vmem [#allocation6], %s1287
          %1289 = dma.done %s1285, 32
        $region68: #{tpu_custom_call.1} parent=51 // pred_fallthru
          _
      $region52: #{tpu_custom_call.1} parent=5 // pred_fallthru
        _
    $region6: #{tpu_custom_call.1} parent=1 // loop_footer
      %s23 = sadd.s32 1, %s19
    $region7: #{tpu_custom_call.1} parent=1 // loop_footer_branch
      %18 = sbr.rel target = $region3
    $region8: #{tpu_custom_call.1} parent=1 // loop_exit
      _
    %1290 = vsyncpa [#allocation3], 1
    %s1291 = scalar_lea.sflag [#allocation3], 1
    %1292 = vsyncpa %s1291, 1
    %1293 = vsyncpa [#allocation5], 1
    %s1294 = scalar_lea.sflag [#allocation5], 1
    %1295 = vsyncpa %s1294, 1

</llo_original>
